<compile_context>
chip_gen: v7x
topology: tpu7x:2x2x1
jax: 0.10.0
libtpu: 0.0.40
codegen_flags: <defaults>
</compile_context>

<pallas_src>
import jax
import jax.numpy as jnp
from jax.experimental import pallas as pl
from jax.experimental.pallas import tpu as pltpu


# ------------------------------- helpers ----------------------------------- #
def _round_up(x, m):
    return (x + m - 1) // m * m


def _pad_gate_rows(w, H, HP):
    """(4H, X) -> (4*HP, X): each of the 4 gate blocks zero-padded from H to HP rows."""
    parts = []
    for k in range(4):
        blk = w[k * H:(k + 1) * H]
        parts.append(jnp.pad(blk, ((0, HP - H), (0, 0))))
    return jnp.concatenate(parts, axis=0)


def _vmem_budget_bytes():
    """Chip-aware VMEM budget (half of physical, capped at 64 MiB); 16 MiB fallback."""
    try:
        info = pltpu.get_tpu_info()
        cap = int(getattr(info, "vmem_capacity_bytes", 0))
        if cap > 0:
            return min(cap // 2, 64 << 20)
    except Exception:
        pass
    return 16 << 20


def _pick_tt(T, BB, E, HP, N4, budget):
    """Timesteps per grid step, from the VMEM budget minus resident blocks."""
    # per timestep: x (bf16, double-buffered) + out (f32, double-buffered) + gx scratch
    per_t = BB * (2 * E * 2 + 2 * HP * 4 + N4 * 4)
    # resident (double-buffered by default): W_ih^T, bias, W_hh^T, lens; plus h_n/c_n.
    resident = (2 * (E * N4 * 2 + N4 * 4 + HP * N4 * 2 + BB * HP * 4)
                + 4 * BB * HP * 4)
    avail = budget - resident - (1 << 20)          # 1 MiB slack
    return int(max(1, min(T, 32, avail // per_t)))  # cap unroll length at 32


# ------------- fused kernel: input projection + LSTM recurrence -------------- #
def _lstm_fused_kernel(x_ref, lens_ref, wih_ref, bias_ref, whh_ref,
                       out_ref, hn_ref, cn_ref, gx_ref):
    t_blk = pl.program_id(1)

    @pl.when(t_blk == 0)
    def _():
        hn_ref[...] = jnp.zeros_like(hn_ref)
        cn_ref[...] = jnp.zeros_like(cn_ref)

    TT, BB, E = x_ref.shape
    HP = hn_ref.shape[1]
    N4 = 4 * HP

    # Fused, time-parallel input projection: one big bf16 MXU matmul per block,
    # f32 accumulate, bias folded in.  Lands in VMEM scratch (never touches HBM).
    x2 = x_ref[...].reshape(TT * BB, E)                               # bf16
    gx = jnp.dot(x2, wih_ref[...], preferred_element_type=jnp.float32) \
        + bias_ref[...]
    gx_ref[...] = gx.reshape(TT, BB, N4)

    lens = lens_ref[...]              # (BB, HP) int32, lane-dense valid mask source
    whh = whh_ref[...]                # (HP, 4*HP) bf16, VMEM-resident across grid

    def step(i, carry):
        h, c = carry                  # f32 carries
        t = t_blk * TT + i
        # Only one small matmul per step (bf16 operands, f32 accumulate).
        gates = gx_ref[i] + jnp.dot(h.astype(whh.dtype), whh,
                                    preferred_element_type=jnp.float32)
        i_g = jax.nn.sigmoid(gates[:, 0 * HP:1 * HP])
        f_g = jax.nn.sigmoid(gates[:, 1 * HP:2 * HP])
        g_g = jnp.tanh(gates[:, 2 * HP:3 * HP])
        o_g = jax.nn.sigmoid(gates[:, 3 * HP:4 * HP])
        c_new = f_g * c + i_g * g_g
        h_new = o_g * jnp.tanh(c_new)
        valid = t < lens                                    # (BB, HP) bool
        out_ref[i] = jnp.where(valid, h_new, 0.0).astype(out_ref.dtype)  # pad -> 0
        return (jnp.where(valid, h_new, h),                 # pack_padded emulation
                jnp.where(valid, c_new, c))

    h_fin, c_fin = jax.lax.fori_loop(
        0, TT, step, (hn_ref[...], cn_ref[...]), unroll=True)
    hn_ref[...] = h_fin
    cn_ref[...] = c_fin


# ----------------------------- Pallas wrapper ------------------------------- #
def lstm_forward_pallas(seq_input, seq_lens, w_ih, w_hh, b_ih, b_hh):
    """seq_input: (B, T, E) batch-first. Returns (outs (B,T,H), h_n (B,H), c_n (B,H))."""
    B, T, E = seq_input.shape
    H = w_hh.shape[1]
    HP = _round_up(H, 128)                 # lane-dense hidden width
    N4 = 4 * HP
    f32, bf16 = jnp.float32, jnp.bfloat16

    # Batch blocking: 16-row sublane alignment (safe for bf16 packing), grow toward
    # 256 rows per block before adding grid steps; leading grid axis is "parallel".
    BB = min(_round_up(B, 16), 256)
    NB = -(-_round_up(B, 16) // BB)
    BPT = NB * BB

    budget = _vmem_budget_bytes()
    TT = _pick_tt(T, BB, E, HP, N4, budget)
    NT = -(-T // TT)
    TP = NT * TT                           # pad T up to a multiple of TT

    # Gate-padded weights / bias (padded lanes exactly zero); bf16 MXU operands.
    wih_t = _pad_gate_rows(w_ih.astype(f32), H, HP).T.astype(bf16)      # (E, 4*HP)
    whh_p = _pad_gate_rows(w_hh.astype(f32), H, HP)                     # (4*HP, H)
    whh_t = jnp.pad(whh_p, ((0, 0), (0, HP - H))).T.astype(bf16)        # (HP, 4*HP)
    bias = _pad_gate_rows((b_ih + b_hh).astype(f32)[:, None], H, HP).T  # (1, 4*HP) f32

    # Inputs: time-major bf16, padded in time (to TP) and batch (to BPT) with zeros.
    x_tbe = jnp.transpose(seq_input, (1, 0, 2)).astype(bf16)            # (T, B, E)
    x_tbe = jnp.pad(x_tbe, ((0, TP - T), (0, BPT - B), (0, 0)))         # (TP, BPT, E)

    lens_p = jnp.pad(seq_lens.astype(jnp.int32), (0, BPT - B))          # pad rows: len 0
    lens_b = jnp.broadcast_to(lens_p[:, None], (BPT, HP))               # lane-dense mask

    outs, h_n, c_n = pl.pallas_call(
        _lstm_fused_kernel,
        out_shape=(jax.ShapeDtypeStruct((TP, BPT, HP), f32),
                   jax.ShapeDtypeStruct((BPT, HP), f32),
                   jax.ShapeDtypeStruct((BPT, HP), f32)),
        grid_spec=pltpu.PrefetchScalarGridSpec(
            num_scalar_prefetch=0,
            grid=(NB, NT),                                  # (batch blocks, time blocks)
            in_specs=[
                pl.BlockSpec((TT, BB, E), lambda b, t: (t, b, 0)),   # raw x block
                pl.BlockSpec((BB, HP), lambda b, t: (b, 0)),         # lens (resident in t)
                pl.BlockSpec((E, N4), lambda b, t: (0, 0)),          # W_ih^T (resident)
                pl.BlockSpec((1, N4), lambda b, t: (0, 0)),          # bias   (resident)
                pl.BlockSpec((HP, N4), lambda b, t: (0, 0)),         # W_hh^T (resident)
            ],
            out_specs=[
                pl.BlockSpec((TT, BB, HP), lambda b, t: (t, b, 0)),  # padded outputs
                pl.BlockSpec((BB, HP), lambda b, t: (b, 0)),         # h_n (resident in t)
                pl.BlockSpec((BB, HP), lambda b, t: (b, 0)),         # c_n (resident in t)
            ],
            scratch_shapes=[pltpu.VMEM((TT, BB, N4), f32)],          # fused gx block
        ),
        compiler_params=pltpu.CompilerParams(
            dimension_semantics=("parallel", "arbitrary"),           # batch ∥, time seq
            vmem_limit_bytes=int(budget)),
    )(x_tbe, lens_b, wih_t, bias, whh_t)

    # TODO(synk): check in HLO that this slice + transpose (+ the fwd_order gather in
    #             dynamic_rnn_forward) fuse into a single pass over the output.
    outs = jnp.transpose(outs[:T, :B, :H], (1, 0, 2))                # (B, T, H)
    return outs, h_n[:B, :H], c_n[:B, :H]


# ------------------------- DynamicRNN forward (glue) ------------------------ #
def dynamic_rnn_forward(seq_input, seq_lens, params):
    """seq_input: (B, T, E); seq_lens: (B,) int.

    Returns ((padded_outputs_sorted, sorted_lens), (h_n, c_n)) matching the
    PyTorch module (outputs in length-descending order; h_n/c_n original order).
    """
    w_ih, w_hh, b_ih, b_hh = params
    fwd_order = jnp.argsort(-seq_lens)             # torch.sort(descending=True)
    sorted_len = seq_lens[fwd_order]
    # The LSTM treats batch rows independently, so we run in original order and only
    # sort the padded outputs; h_n/c_n already come out in original order.
    outs_bth, h_n, c_n = lstm_forward_pallas(seq_input, seq_lens,
                                             w_ih, w_hh, b_ih, b_hh)
    outputs_sorted = outs_bth[fwd_order]           # sorted order (module quirk)
    return (outputs_sorted, sorted_len), (h_n, c_n)


# --------------------------- pure-JAX reference ----------------------------- #
def _lstm_ref(x_tbe, lens, w_ih, w_hh, b_ih, b_hh):
    T, B, E = x_tbe.shape
    H = w_hh.shape[1]

    def step(carry, x_t):
        h, c, t = carry
        gates = x_t @ w_ih.T + h @ w_hh.T + b_ih + b_hh
        i = jax.nn.sigmoid(gates[:, :H]); f = jax.nn.sigmoid(gates[:, H:2 * H])
        g = jnp.tanh(gates[:, 2 * H:3 * H]); o = jax.nn.sigmoid(gates[:, 3 * H:])
        c_new = f * c + i * g
        h_new = o * jnp.tanh(c_new)
        valid = (t < lens)[:, None].astype(jnp.float32)
        return (valid * h_new + (1 - valid) * h,
                valid * c_new + (1 - valid) * c, t + 1), valid * h_new

    (h, c, _), outs = jax.lax.scan(
        step, (jnp.zeros((B, H), jnp.float32), jnp.zeros((B, H), jnp.float32), 0), x_tbe)
    return outs, h, c


# ---------------------------------- main ------------------------------------ #
if __name__ == "__main__":
    B, T, E, H = 2, 8, 32, 32
    key = jax.random.PRNGKey(0)
    kx, k1, k2, k3, k4 = jax.random.split(key, 5)

    seq_input = jax.random.normal(kx, (B, T, E), dtype=jnp.float32)
    seq_lens = jnp.array([5, 8], dtype=jnp.int32)     # distinct lengths (no sort ties)

    bound = 1.0 / (H ** 0.5)                          # PyTorch LSTM default init range
    w_ih = jax.random.uniform(k1, (4 * H, E), jnp.float32, -bound, bound)
    w_hh = jax.random.uniform(k2, (4 * H, H), jnp.float32, -bound, bound)
    b_ih = jax.random.uniform(k3, (4 * H,), jnp.float32, -bound, bound)
    b_hh = jax.random.uniform(k4, (4 * H,), jnp.float32, -bound, bound)
    params = (w_ih, w_hh, b_ih, b_hh)

    (outputs, sorted_len), (h_n, c_n) = dynamic_rnn_forward(seq_input, seq_lens, params)
    jax.block_until_ready((outputs, sorted_len, h_n, c_n))

    # Validate against a pure-f32 JAX reference LSTM.  Tolerance accounts for the
    # bf16 MXU operands (x, h, W_ih, W_hh); carries/elementwise remain f32.
    x_tbe = jnp.transpose(seq_input, (1, 0, 2))
    ref_outs, ref_h, ref_c = _lstm_ref(x_tbe, seq_lens, *params)
    fwd_order = jnp.argsort(-seq_lens)
    ref_outputs_sorted = jnp.transpose(ref_outs, (1, 0, 2))[fwd_order]

    assert outputs.shape == (B, T, H)
    assert jnp.allclose(outputs, ref_outputs_sorted, atol=3e-2, rtol=3e-2)
    assert jnp.allclose(h_n, ref_h, atol=3e-2, rtol=3e-2)
    assert jnp.allclose(c_n, ref_c, atol=3e-2, rtol=3e-2)

    print("KERNEL_OK")
</pallas_src>

<mosaic_0001>
module attributes {stable_mosaic.version = 11 : i64} {
  func.func @_lstm_fused_kernel(%arg0: i32, %arg1: i32, %arg2: memref<8x16x32xbf16, #tpu.memory_space<vmem>>, %arg3: memref<16x128xi32, #tpu.memory_space<vmem>>, %arg4: memref<32x512xbf16, #tpu.memory_space<vmem>>, %arg5: memref<1x512xf32, #tpu.memory_space<vmem>>, %arg6: memref<128x512xbf16, #tpu.memory_space<vmem>>, %arg7: memref<8x16x128xf32, #tpu.memory_space<vmem>>, %arg8: memref<16x128xf32, #tpu.memory_space<vmem>>, %arg9: memref<16x128xf32, #tpu.memory_space<vmem>>, %arg10: memref<8x16x512xf32, #tpu.memory_space<vmem>>) attributes {dimension_semantics = [#tpu.dimension_semantics<parallel>, #tpu.dimension_semantics<arbitrary>], iteration_bounds = array<i64: 1, 1>, scalar_prefetch = 0 : i64, scratch_operands = 1 : i64, tpu.core_type = #tpu.core_type<tc>, window_params = [{transform_indices = @transform_0, window_bounds = array<i64: 8, 16, 32>}, {transform_indices = @transform_1, window_bounds = array<i64: 16, 128>}, {pipeline_mode = #tpu.pipeline_mode<synchronous>, transform_indices = @transform_2, window_bounds = array<i64: 32, 512>}, {pipeline_mode = #tpu.pipeline_mode<synchronous>, transform_indices = @transform_3, window_bounds = array<i64: 1, 512>}, {pipeline_mode = #tpu.pipeline_mode<synchronous>, transform_indices = @transform_4, window_bounds = array<i64: 128, 512>}, {transform_indices = @transform_5, window_bounds = array<i64: 8, 16, 128>}, {transform_indices = @transform_6, window_bounds = array<i64: 16, 128>}, {transform_indices = @transform_7, window_bounds = array<i64: 16, 128>}]} {
    %c0_i32 = arith.constant 0 : i32
    %0 = arith.cmpi eq, %arg1, %c0_i32 : i32
    %1 = arith.extui %0 : i1 to i32
    %c0_i32_0 = arith.constant 0 : i32
    %2 = arith.cmpi ne, %1, %c0_i32_0 : i32
    scf.if %2 {
      %cst_103 = arith.constant 0.000000e+00 : f32
      %362 = vector.broadcast %cst_103 : f32 to vector<16x128xf32>
      %c0_104 = arith.constant 0 : index
      %c0_105 = arith.constant 0 : index
      %363 = vector.load %arg8[%c0_104, %c0_105] : memref<16x128xf32, #tpu.memory_space<vmem>>, vector<16x128xf32>
      tpu.vector_store %arg8[%c0_104, %c0_105], %362 {strides = array<i32>} : memref<16x128xf32, #tpu.memory_space<vmem>>, vector<16x128xf32>,
      %cst_106 = arith.constant 0.000000e+00 : f32
      %364 = vector.broadcast %cst_106 : f32 to vector<16x128xf32>
      %c0_107 = arith.constant 0 : index
      %c0_108 = arith.constant 0 : index
      %365 = vector.load %arg9[%c0_107, %c0_108] : memref<16x128xf32, #tpu.memory_space<vmem>>, vector<16x128xf32>
      tpu.vector_store %arg9[%c0_107, %c0_108], %364 {strides = array<i32>} : memref<16x128xf32, #tpu.memory_space<vmem>>, vector<16x128xf32>,
    } else {
    }
    %c0 = arith.constant 0 : index
    %c0_1 = arith.constant 0 : index
    %c0_2 = arith.constant 0 : index
    %3 = vector.load %arg2[%c0, %c0_1, %c0_2] : memref<8x16x32xbf16, #tpu.memory_space<vmem>>, vector<8x16x32xbf16>
    %4 = vector.shape_cast %3 : vector<8x16x32xbf16> to vector<128x32xbf16>
    %c0_3 = arith.constant 0 : index
    %c0_4 = arith.constant 0 : index
    %5 = vector.load %arg4[%c0_3, %c0_4] : memref<32x512xbf16, #tpu.memory_space<vmem>>, vector<32x512xbf16>
    %cst = arith.constant dense<0.000000e+00> : vector<128x512xf32>
    %6 = tpu.matmul %4, %5, %cst {dimension_numbers = #tpu.dot_dimension_numbers<[1], [0], [0], [1], [0, 0, 1, 1], [], []>} : vector<128x32xbf16>, vector<32x512xbf16>, vector<128x512xf32> -> vector<128x512xf32>
    %c0_5 = arith.constant 0 : index
    %c0_6 = arith.constant 0 : index
    %7 = vector.load %arg5[%c0_5, %c0_6] : memref<1x512xf32, #tpu.memory_space<vmem>>, vector<1x512xf32>
    %8 = vector.broadcast %7 : vector<1x512xf32> to vector<128x512xf32>
    %9 = arith.addf %6, %8 : vector<128x512xf32>
    %10 = vector.shape_cast %9 : vector<128x512xf32> to vector<8x16x512xf32>
    %c0_7 = arith.constant 0 : index
    %c0_8 = arith.constant 0 : index
    %c0_9 = arith.constant 0 : index
    %11 = vector.load %arg10[%c0_7, %c0_8, %c0_9] : memref<8x16x512xf32, #tpu.memory_space<vmem>>, vector<8x16x512xf32>
    tpu.vector_store %arg10[%c0_7, %c0_8, %c0_9], %10 {strides = array<i32>} : memref<8x16x512xf32, #tpu.memory_space<vmem>>, vector<8x16x512xf32>,
    %c0_10 = arith.constant 0 : index
    %c0_11 = arith.constant 0 : index
    %12 = vector.load %arg3[%c0_10, %c0_11] : memref<16x128xi32, #tpu.memory_space<vmem>>, vector<16x128xi32>
    %c0_12 = arith.constant 0 : index
    %c0_13 = arith.constant 0 : index
    %13 = vector.load %arg6[%c0_12, %c0_13] : memref<128x512xbf16, #tpu.memory_space<vmem>>, vector<128x512xbf16>
    %c0_14 = arith.constant 0 : index
    %c0_15 = arith.constant 0 : index
    %14 = vector.load %arg8[%c0_14, %c0_15] : memref<16x128xf32, #tpu.memory_space<vmem>>, vector<16x128xf32>
    %c0_16 = arith.constant 0 : index
    %c0_17 = arith.constant 0 : index
    %15 = vector.load %arg9[%c0_16, %c0_17] : memref<16x128xf32, #tpu.memory_space<vmem>>, vector<16x128xf32>
    %c0_i32_18 = arith.constant 0 : i32
    %c8_i32 = arith.constant 8 : i32
    %16 = arith.muli %arg1, %c8_i32 : i32
    %17 = arith.addi %16, %c0_i32_18 : i32
    %18 = arith.index_cast %c0_i32_18 : i32 to index
    %c0_19 = arith.constant 0 : index
    %c0_20 = arith.constant 0 : index
    %19 = vector.load %arg10[%18, %c0_19, %c0_20] : memref<8x16x512xf32, #tpu.memory_space<vmem>>, vector<1x16x512xf32>
    %20 = vector.shape_cast %19 : vector<1x16x512xf32> to vector<16x512xf32>
    %21 = arith.truncf %14 : vector<16x128xf32> to vector<16x128xbf16>
    %cst_21 = arith.constant dense<0.000000e+00> : vector<16x512xf32>
    %22 = tpu.matmul %21, %13, %cst_21 {dimension_numbers = #tpu.dot_dimension_numbers<[1], [0], [0], [1], [0, 0, 1, 1], [], []>} : vector<16x128xbf16>, vector<128x512xbf16>, vector<16x512xf32> -> vector<16x512xf32>
    %23 = arith.addf %20, %22 : vector<16x512xf32>
    %24 = vector.extract_strided_slice %23 {offsets = [0, 0], sizes = [16, 128], strides = [1, 1]} : vector<16x512xf32> to vector<16x128xf32>
    %25 = arith.negf %24 : vector<16x128xf32>
    %26 = math.exp %25 : vector<16x128xf32>
    %cst_22 = arith.constant 1.000000e+00 : f32
    %27 = vector.broadcast %cst_22 : f32 to vector<16x128xf32>
    %28 = arith.addf %27, %26 : vector<16x128xf32>
    %29 = arith.divf %27, %28 : vector<16x128xf32>
    %30 = vector.extract_strided_slice %23 {offsets = [0, 128], sizes = [16, 128], strides = [1, 1]} : vector<16x512xf32> to vector<16x128xf32>
    %31 = arith.negf %30 : vector<16x128xf32>
    %32 = math.exp %31 : vector<16x128xf32>
    %cst_23 = arith.constant 1.000000e+00 : f32
    %33 = vector.broadcast %cst_23 : f32 to vector<16x128xf32>
    %34 = arith.addf %33, %32 : vector<16x128xf32>
    %35 = arith.divf %33, %34 : vector<16x128xf32>
    %36 = vector.extract_strided_slice %23 {offsets = [0, 256], sizes = [16, 128], strides = [1, 1]} : vector<16x512xf32> to vector<16x128xf32>
    %37 = math.tanh %36 : vector<16x128xf32>
    %38 = vector.extract_strided_slice %23 {offsets = [0, 384], sizes = [16, 128], strides = [1, 1]} : vector<16x512xf32> to vector<16x128xf32>
    %39 = arith.negf %38 : vector<16x128xf32>
    %40 = math.exp %39 : vector<16x128xf32>
    %cst_24 = arith.constant 1.000000e+00 : f32
    %41 = vector.broadcast %cst_24 : f32 to vector<16x128xf32>
    %42 = arith.addf %41, %40 : vector<16x128xf32>
    %43 = arith.divf %41, %42 : vector<16x128xf32>
    %44 = arith.mulf %35, %15 : vector<16x128xf32>
    %45 = arith.mulf %29, %37 : vector<16x128xf32>
    %46 = arith.addf %44, %45 : vector<16x128xf32>
    %47 = math.tanh %46 : vector<16x128xf32>
    %48 = arith.mulf %43, %47 : vector<16x128xf32>
    %49 = vector.broadcast %17 : i32 to vector<16x128xi32>
    %50 = arith.cmpi slt, %49, %12 : vector<16x128xi32>
    %cst_25 = arith.constant 0.000000e+00 : f32
    %51 = vector.broadcast %cst_25 : f32 to vector<16x128xf32>
    %52 = arith.select %50, %48, %51 : vector<16x128xi1>, vector<16x128xf32>
    %53 = arith.index_cast %c0_i32_18 : i32 to index
    %c0_26 = arith.constant 0 : index
    %c0_27 = arith.constant 0 : index
    %54 = vector.load %arg7[%53, %c0_26, %c0_27] : memref<8x16x128xf32, #tpu.memory_space<vmem>>, vector<1x16x128xf32>
    %55 = vector.shape_cast %54 : vector<1x16x128xf32> to vector<16x128xf32>
    %56 = vector.shape_cast %52 : vector<16x128xf32> to vector<1x16x128xf32>
    tpu.vector_store %arg7[%53, %c0_26, %c0_27], %56 {strides = array<i32>} : memref<8x16x128xf32, #tpu.memory_space<vmem>>, vector<1x16x128xf32>,
    %57 = arith.select %50, %48, %14 : vector<16x128xi1>, vector<16x128xf32>
    %58 = arith.select %50, %46, %15 : vector<16x128xi1>, vector<16x128xf32>
    %c1_i32 = arith.constant 1 : i32
    %c8_i32_28 = arith.constant 8 : i32
    %59 = arith.muli %arg1, %c8_i32_28 : i32
    %60 = arith.addi %59, %c1_i32 : i32
    %61 = arith.index_cast %c1_i32 : i32 to index
    %c0_29 = arith.constant 0 : index
    %c0_30 = arith.constant 0 : index
    %62 = vector.load %arg10[%61, %c0_29, %c0_30] : memref<8x16x512xf32, #tpu.memory_space<vmem>>, vector<1x16x512xf32>
    %63 = vector.shape_cast %62 : vector<1x16x512xf32> to vector<16x512xf32>
    %64 = arith.truncf %57 : vector<16x128xf32> to vector<16x128xbf16>
    %cst_31 = arith.constant dense<0.000000e+00> : vector<16x512xf32>
    %65 = tpu.matmul %64, %13, %cst_31 {dimension_numbers = #tpu.dot_dimension_numbers<[1], [0], [0], [1], [0, 0, 1, 1], [], []>} : vector<16x128xbf16>, vector<128x512xbf16>, vector<16x512xf32> -> vector<16x512xf32>
    %66 = arith.addf %63, %65 : vector<16x512xf32>
    %67 = vector.extract_strided_slice %66 {offsets = [0, 0], sizes = [16, 128], strides = [1, 1]} : vector<16x512xf32> to vector<16x128xf32>
    %68 = arith.negf %67 : vector<16x128xf32>
    %69 = math.exp %68 : vector<16x128xf32>
    %cst_32 = arith.constant 1.000000e+00 : f32
    %70 = vector.broadcast %cst_32 : f32 to vector<16x128xf32>
    %71 = arith.addf %70, %69 : vector<16x128xf32>
    %72 = arith.divf %70, %71 : vector<16x128xf32>
    %73 = vector.extract_strided_slice %66 {offsets = [0, 128], sizes = [16, 128], strides = [1, 1]} : vector<16x512xf32> to vector<16x128xf32>
    %74 = arith.negf %73 : vector<16x128xf32>
    %75 = math.exp %74 : vector<16x128xf32>
    %cst_33 = arith.constant 1.000000e+00 : f32
    %76 = vector.broadcast %cst_33 : f32 to vector<16x128xf32>
    %77 = arith.addf %76, %75 : vector<16x128xf32>
    %78 = arith.divf %76, %77 : vector<16x128xf32>
    %79 = vector.extract_strided_slice %66 {offsets = [0, 256], sizes = [16, 128], strides = [1, 1]} : vector<16x512xf32> to vector<16x128xf32>
    %80 = math.tanh %79 : vector<16x128xf32>
    %81 = vector.extract_strided_slice %66 {offsets = [0, 384], sizes = [16, 128], strides = [1, 1]} : vector<16x512xf32> to vector<16x128xf32>
    %82 = arith.negf %81 : vector<16x128xf32>
    %83 = math.exp %82 : vector<16x128xf32>
    %cst_34 = arith.constant 1.000000e+00 : f32
    %84 = vector.broadcast %cst_34 : f32 to vector<16x128xf32>
    %85 = arith.addf %84, %83 : vector<16x128xf32>
    %86 = arith.divf %84, %85 : vector<16x128xf32>
    %87 = arith.mulf %78, %58 : vector<16x128xf32>
    %88 = arith.mulf %72, %80 : vector<16x128xf32>
    %89 = arith.addf %87, %88 : vector<16x128xf32>
    %90 = math.tanh %89 : vector<16x128xf32>
    %91 = arith.mulf %86, %90 : vector<16x128xf32>
    %92 = vector.broadcast %60 : i32 to vector<16x128xi32>
    %93 = arith.cmpi slt, %92, %12 : vector<16x128xi32>
    %cst_35 = arith.constant 0.000000e+00 : f32
    %94 = vector.broadcast %cst_35 : f32 to vector<16x128xf32>
    %95 = arith.select %93, %91, %94 : vector<16x128xi1>, vector<16x128xf32>
    %96 = arith.index_cast %c1_i32 : i32 to index
    %c0_36 = arith.constant 0 : index
    %c0_37 = arith.constant 0 : index
    %97 = vector.load %arg7[%96, %c0_36, %c0_37] : memref<8x16x128xf32, #tpu.memory_space<vmem>>, vector<1x16x128xf32>
    %98 = vector.shape_cast %97 : vector<1x16x128xf32> to vector<16x128xf32>
    %99 = vector.shape_cast %95 : vector<16x128xf32> to vector<1x16x128xf32>
    tpu.vector_store %arg7[%96, %c0_36, %c0_37], %99 {strides = array<i32>} : memref<8x16x128xf32, #tpu.memory_space<vmem>>, vector<1x16x128xf32>,
    %100 = arith.select %93, %91, %57 : vector<16x128xi1>, vector<16x128xf32>
    %101 = arith.select %93, %89, %58 : vector<16x128xi1>, vector<16x128xf32>
    %c2_i32 = arith.constant 2 : i32
    %c8_i32_38 = arith.constant 8 : i32
    %102 = arith.muli %arg1, %c8_i32_38 : i32
    %103 = arith.addi %102, %c2_i32 : i32
    %104 = arith.index_cast %c2_i32 : i32 to index
    %c0_39 = arith.constant 0 : index
    %c0_40 = arith.constant 0 : index
    %105 = vector.load %arg10[%104, %c0_39, %c0_40] : memref<8x16x512xf32, #tpu.memory_space<vmem>>, vector<1x16x512xf32>
    %106 = vector.shape_cast %105 : vector<1x16x512xf32> to vector<16x512xf32>
    %107 = arith.truncf %100 : vector<16x128xf32> to vector<16x128xbf16>
    %cst_41 = arith.constant dense<0.000000e+00> : vector<16x512xf32>
    %108 = tpu.matmul %107, %13, %cst_41 {dimension_numbers = #tpu.dot_dimension_numbers<[1], [0], [0], [1], [0, 0, 1, 1], [], []>} : vector<16x128xbf16>, vector<128x512xbf16>, vector<16x512xf32> -> vector<16x512xf32>
    %109 = arith.addf %106, %108 : vector<16x512xf32>
    %110 = vector.extract_strided_slice %109 {offsets = [0, 0], sizes = [16, 128], strides = [1, 1]} : vector<16x512xf32> to vector<16x128xf32>
    %111 = arith.negf %110 : vector<16x128xf32>
    %112 = math.exp %111 : vector<16x128xf32>
    %cst_42 = arith.constant 1.000000e+00 : f32
    %113 = vector.broadcast %cst_42 : f32 to vector<16x128xf32>
    %114 = arith.addf %113, %112 : vector<16x128xf32>
    %115 = arith.divf %113, %114 : vector<16x128xf32>
    %116 = vector.extract_strided_slice %109 {offsets = [0, 128], sizes = [16, 128], strides = [1, 1]} : vector<16x512xf32> to vector<16x128xf32>
    %117 = arith.negf %116 : vector<16x128xf32>
    %118 = math.exp %117 : vector<16x128xf32>
    %cst_43 = arith.constant 1.000000e+00 : f32
    %119 = vector.broadcast %cst_43 : f32 to vector<16x128xf32>
    %120 = arith.addf %119, %118 : vector<16x128xf32>
    %121 = arith.divf %119, %120 : vector<16x128xf32>
    %122 = vector.extract_strided_slice %109 {offsets = [0, 256], sizes = [16, 128], strides = [1, 1]} : vector<16x512xf32> to vector<16x128xf32>
    %123 = math.tanh %122 : vector<16x128xf32>
    %124 = vector.extract_strided_slice %109 {offsets = [0, 384], sizes = [16, 128], strides = [1, 1]} : vector<16x512xf32> to vector<16x128xf32>
    %125 = arith.negf %124 : vector<16x128xf32>
    %126 = math.exp %125 : vector<16x128xf32>
    %cst_44 = arith.constant 1.000000e+00 : f32
    %127 = vector.broadcast %cst_44 : f32 to vector<16x128xf32>
    %128 = arith.addf %127, %126 : vector<16x128xf32>
    %129 = arith.divf %127, %128 : vector<16x128xf32>
    %130 = arith.mulf %121, %101 : vector<16x128xf32>
    %131 = arith.mulf %115, %123 : vector<16x128xf32>
    %132 = arith.addf %130, %131 : vector<16x128xf32>
    %133 = math.tanh %132 : vector<16x128xf32>
    %134 = arith.mulf %129, %133 : vector<16x128xf32>
    %135 = vector.broadcast %103 : i32 to vector<16x128xi32>
    %136 = arith.cmpi slt, %135, %12 : vector<16x128xi32>
    %cst_45 = arith.constant 0.000000e+00 : f32
    %137 = vector.broadcast %cst_45 : f32 to vector<16x128xf32>
    %138 = arith.select %136, %134, %137 : vector<16x128xi1>, vector<16x128xf32>
    %139 = arith.index_cast %c2_i32 : i32 to index
    %c0_46 = arith.constant 0 : index
    %c0_47 = arith.constant 0 : index
    %140 = vector.load %arg7[%139, %c0_46, %c0_47] : memref<8x16x128xf32, #tpu.memory_space<vmem>>, vector<1x16x128xf32>
    %141 = vector.shape_cast %140 : vector<1x16x128xf32> to vector<16x128xf32>
    %142 = vector.shape_cast %138 : vector<16x128xf32> to vector<1x16x128xf32>
    tpu.vector_store %arg7[%139, %c0_46, %c0_47], %142 {strides = array<i32>} : memref<8x16x128xf32, #tpu.memory_space<vmem>>, vector<1x16x128xf32>,
    %143 = arith.select %136, %134, %100 : vector<16x128xi1>, vector<16x128xf32>
    %144 = arith.select %136, %132, %101 : vector<16x128xi1>, vector<16x128xf32>
    %c3_i32 = arith.constant 3 : i32
    %c8_i32_48 = arith.constant 8 : i32
    %145 = arith.muli %arg1, %c8_i32_48 : i32
    %146 = arith.addi %145, %c3_i32 : i32
    %147 = arith.index_cast %c3_i32 : i32 to index
    %c0_49 = arith.constant 0 : index
    %c0_50 = arith.constant 0 : index
    %148 = vector.load %arg10[%147, %c0_49, %c0_50] : memref<8x16x512xf32, #tpu.memory_space<vmem>>, vector<1x16x512xf32>
    %149 = vector.shape_cast %148 : vector<1x16x512xf32> to vector<16x512xf32>
    %150 = arith.truncf %143 : vector<16x128xf32> to vector<16x128xbf16>
    %cst_51 = arith.constant dense<0.000000e+00> : vector<16x512xf32>
    %151 = tpu.matmul %150, %13, %cst_51 {dimension_numbers = #tpu.dot_dimension_numbers<[1], [0], [0], [1], [0, 0, 1, 1], [], []>} : vector<16x128xbf16>, vector<128x512xbf16>, vector<16x512xf32> -> vector<16x512xf32>
    %152 = arith.addf %149, %151 : vector<16x512xf32>
    %153 = vector.extract_strided_slice %152 {offsets = [0, 0], sizes = [16, 128], strides = [1, 1]} : vector<16x512xf32> to vector<16x128xf32>
    %154 = arith.negf %153 : vector<16x128xf32>
    %155 = math.exp %154 : vector<16x128xf32>
    %cst_52 = arith.constant 1.000000e+00 : f32
    %156 = vector.broadcast %cst_52 : f32 to vector<16x128xf32>
    %157 = arith.addf %156, %155 : vector<16x128xf32>
    %158 = arith.divf %156, %157 : vector<16x128xf32>
    %159 = vector.extract_strided_slice %152 {offsets = [0, 128], sizes = [16, 128], strides = [1, 1]} : vector<16x512xf32> to vector<16x128xf32>
    %160 = arith.negf %159 : vector<16x128xf32>
    %161 = math.exp %160 : vector<16x128xf32>
    %cst_53 = arith.constant 1.000000e+00 : f32
    %162 = vector.broadcast %cst_53 : f32 to vector<16x128xf32>
    %163 = arith.addf %162, %161 : vector<16x128xf32>
    %164 = arith.divf %162, %163 : vector<16x128xf32>
    %165 = vector.extract_strided_slice %152 {offsets = [0, 256], sizes = [16, 128], strides = [1, 1]} : vector<16x512xf32> to vector<16x128xf32>
    %166 = math.tanh %165 : vector<16x128xf32>
    %167 = vector.extract_strided_slice %152 {offsets = [0, 384], sizes = [16, 128], strides = [1, 1]} : vector<16x512xf32> to vector<16x128xf32>
    %168 = arith.negf %167 : vector<16x128xf32>
    %169 = math.exp %168 : vector<16x128xf32>
    %cst_54 = arith.constant 1.000000e+00 : f32
    %170 = vector.broadcast %cst_54 : f32 to vector<16x128xf32>
    %171 = arith.addf %170, %169 : vector<16x128xf32>
    %172 = arith.divf %170, %171 : vector<16x128xf32>
    %173 = arith.mulf %164, %144 : vector<16x128xf32>
    %174 = arith.mulf %158, %166 : vector<16x128xf32>
    %175 = arith.addf %173, %174 : vector<16x128xf32>
    %176 = math.tanh %175 : vector<16x128xf32>
    %177 = arith.mulf %172, %176 : vector<16x128xf32>
    %178 = vector.broadcast %146 : i32 to vector<16x128xi32>
    %179 = arith.cmpi slt, %178, %12 : vector<16x128xi32>
    %cst_55 = arith.constant 0.000000e+00 : f32
    %180 = vector.broadcast %cst_55 : f32 to vector<16x128xf32>
    %181 = arith.select %179, %177, %180 : vector<16x128xi1>, vector<16x128xf32>
    %182 = arith.index_cast %c3_i32 : i32 to index
    %c0_56 = arith.constant 0 : index
    %c0_57 = arith.constant 0 : index
    %183 = vector.load %arg7[%182, %c0_56, %c0_57] : memref<8x16x128xf32, #tpu.memory_space<vmem>>, vector<1x16x128xf32>
    %184 = vector.shape_cast %183 : vector<1x16x128xf32> to vector<16x128xf32>
    %185 = vector.shape_cast %181 : vector<16x128xf32> to vector<1x16x128xf32>
    tpu.vector_store %arg7[%182, %c0_56, %c0_57], %185 {strides = array<i32>} : memref<8x16x128xf32, #tpu.memory_space<vmem>>, vector<1x16x128xf32>,
    %186 = arith.select %179, %177, %143 : vector<16x128xi1>, vector<16x128xf32>
    %187 = arith.select %179, %175, %144 : vector<16x128xi1>, vector<16x128xf32>
    %c4_i32 = arith.constant 4 : i32
    %c8_i32_58 = arith.constant 8 : i32
    %188 = arith.muli %arg1, %c8_i32_58 : i32
    %189 = arith.addi %188, %c4_i32 : i32
    %190 = arith.index_cast %c4_i32 : i32 to index
    %c0_59 = arith.constant 0 : index
    %c0_60 = arith.constant 0 : index
    %191 = vector.load %arg10[%190, %c0_59, %c0_60] : memref<8x16x512xf32, #tpu.memory_space<vmem>>, vector<1x16x512xf32>
    %192 = vector.shape_cast %191 : vector<1x16x512xf32> to vector<16x512xf32>
    %193 = arith.truncf %186 : vector<16x128xf32> to vector<16x128xbf16>
    %cst_61 = arith.constant dense<0.000000e+00> : vector<16x512xf32>
    %194 = tpu.matmul %193, %13, %cst_61 {dimension_numbers = #tpu.dot_dimension_numbers<[1], [0], [0], [1], [0, 0, 1, 1], [], []>} : vector<16x128xbf16>, vector<128x512xbf16>, vector<16x512xf32> -> vector<16x512xf32>
    %195 = arith.addf %192, %194 : vector<16x512xf32>
    %196 = vector.extract_strided_slice %195 {offsets = [0, 0], sizes = [16, 128], strides = [1, 1]} : vector<16x512xf32> to vector<16x128xf32>
    %197 = arith.negf %196 : vector<16x128xf32>
    %198 = math.exp %197 : vector<16x128xf32>
    %cst_62 = arith.constant 1.000000e+00 : f32
    %199 = vector.broadcast %cst_62 : f32 to vector<16x128xf32>
    %200 = arith.addf %199, %198 : vector<16x128xf32>
    %201 = arith.divf %199, %200 : vector<16x128xf32>
    %202 = vector.extract_strided_slice %195 {offsets = [0, 128], sizes = [16, 128], strides = [1, 1]} : vector<16x512xf32> to vector<16x128xf32>
    %203 = arith.negf %202 : vector<16x128xf32>
    %204 = math.exp %203 : vector<16x128xf32>
    %cst_63 = arith.constant 1.000000e+00 : f32
    %205 = vector.broadcast %cst_63 : f32 to vector<16x128xf32>
    %206 = arith.addf %205, %204 : vector<16x128xf32>
    %207 = arith.divf %205, %206 : vector<16x128xf32>
    %208 = vector.extract_strided_slice %195 {offsets = [0, 256], sizes = [16, 128], strides = [1, 1]} : vector<16x512xf32> to vector<16x128xf32>
    %209 = math.tanh %208 : vector<16x128xf32>
    %210 = vector.extract_strided_slice %195 {offsets = [0, 384], sizes = [16, 128], strides = [1, 1]} : vector<16x512xf32> to vector<16x128xf32>
    %211 = arith.negf %210 : vector<16x128xf32>
    %212 = math.exp %211 : vector<16x128xf32>
    %cst_64 = arith.constant 1.000000e+00 : f32
    %213 = vector.broadcast %cst_64 : f32 to vector<16x128xf32>
    %214 = arith.addf %213, %212 : vector<16x128xf32>
    %215 = arith.divf %213, %214 : vector<16x128xf32>
    %216 = arith.mulf %207, %187 : vector<16x128xf32>
    %217 = arith.mulf %201, %209 : vector<16x128xf32>
    %218 = arith.addf %216, %217 : vector<16x128xf32>
    %219 = math.tanh %218 : vector<16x128xf32>
    %220 = arith.mulf %215, %219 : vector<16x128xf32>
    %221 = vector.broadcast %189 : i32 to vector<16x128xi32>
    %222 = arith.cmpi slt, %221, %12 : vector<16x128xi32>
    %cst_65 = arith.constant 0.000000e+00 : f32
    %223 = vector.broadcast %cst_65 : f32 to vector<16x128xf32>
    %224 = arith.select %222, %220, %223 : vector<16x128xi1>, vector<16x128xf32>
    %225 = arith.index_cast %c4_i32 : i32 to index
    %c0_66 = arith.constant 0 : index
    %c0_67 = arith.constant 0 : index
    %226 = vector.load %arg7[%225, %c0_66, %c0_67] : memref<8x16x128xf32, #tpu.memory_space<vmem>>, vector<1x16x128xf32>
    %227 = vector.shape_cast %226 : vector<1x16x128xf32> to vector<16x128xf32>
    %228 = vector.shape_cast %224 : vector<16x128xf32> to vector<1x16x128xf32>
    tpu.vector_store %arg7[%225, %c0_66, %c0_67], %228 {strides = array<i32>} : memref<8x16x128xf32, #tpu.memory_space<vmem>>, vector<1x16x128xf32>,
    %229 = arith.select %222, %220, %186 : vector<16x128xi1>, vector<16x128xf32>
    %230 = arith.select %222, %218, %187 : vector<16x128xi1>, vector<16x128xf32>
    %c5_i32 = arith.constant 5 : i32
    %c8_i32_68 = arith.constant 8 : i32
    %231 = arith.muli %arg1, %c8_i32_68 : i32
    %232 = arith.addi %231, %c5_i32 : i32
    %233 = arith.index_cast %c5_i32 : i32 to index
    %c0_69 = arith.constant 0 : index
    %c0_70 = arith.constant 0 : index
    %234 = vector.load %arg10[%233, %c0_69, %c0_70] : memref<8x16x512xf32, #tpu.memory_space<vmem>>, vector<1x16x512xf32>
    %235 = vector.shape_cast %234 : vector<1x16x512xf32> to vector<16x512xf32>
    %236 = arith.truncf %229 : vector<16x128xf32> to vector<16x128xbf16>
    %cst_71 = arith.constant dense<0.000000e+00> : vector<16x512xf32>
    %237 = tpu.matmul %236, %13, %cst_71 {dimension_numbers = #tpu.dot_dimension_numbers<[1], [0], [0], [1], [0, 0, 1, 1], [], []>} : vector<16x128xbf16>, vector<128x512xbf16>, vector<16x512xf32> -> vector<16x512xf32>
    %238 = arith.addf %235, %237 : vector<16x512xf32>
    %239 = vector.extract_strided_slice %238 {offsets = [0, 0], sizes = [16, 128], strides = [1, 1]} : vector<16x512xf32> to vector<16x128xf32>
    %240 = arith.negf %239 : vector<16x128xf32>
    %241 = math.exp %240 : vector<16x128xf32>
    %cst_72 = arith.constant 1.000000e+00 : f32
    %242 = vector.broadcast %cst_72 : f32 to vector<16x128xf32>
    %243 = arith.addf %242, %241 : vector<16x128xf32>
    %244 = arith.divf %242, %243 : vector<16x128xf32>
    %245 = vector.extract_strided_slice %238 {offsets = [0, 128], sizes = [16, 128], strides = [1, 1]} : vector<16x512xf32> to vector<16x128xf32>
    %246 = arith.negf %245 : vector<16x128xf32>
    %247 = math.exp %246 : vector<16x128xf32>
    %cst_73 = arith.constant 1.000000e+00 : f32
    %248 = vector.broadcast %cst_73 : f32 to vector<16x128xf32>
    %249 = arith.addf %248, %247 : vector<16x128xf32>
    %250 = arith.divf %248, %249 : vector<16x128xf32>
    %251 = vector.extract_strided_slice %238 {offsets = [0, 256], sizes = [16, 128], strides = [1, 1]} : vector<16x512xf32> to vector<16x128xf32>
    %252 = math.tanh %251 : vector<16x128xf32>
    %253 = vector.extract_strided_slice %238 {offsets = [0, 384], sizes = [16, 128], strides = [1, 1]} : vector<16x512xf32> to vector<16x128xf32>
    %254 = arith.negf %253 : vector<16x128xf32>
    %255 = math.exp %254 : vector<16x128xf32>
    %cst_74 = arith.constant 1.000000e+00 : f32
    %256 = vector.broadcast %cst_74 : f32 to vector<16x128xf32>
    %257 = arith.addf %256, %255 : vector<16x128xf32>
    %258 = arith.divf %256, %257 : vector<16x128xf32>
    %259 = arith.mulf %250, %230 : vector<16x128xf32>
    %260 = arith.mulf %244, %252 : vector<16x128xf32>
    %261 = arith.addf %259, %260 : vector<16x128xf32>
    %262 = math.tanh %261 : vector<16x128xf32>
    %263 = arith.mulf %258, %262 : vector<16x128xf32>
    %264 = vector.broadcast %232 : i32 to vector<16x128xi32>
    %265 = arith.cmpi slt, %264, %12 : vector<16x128xi32>
    %cst_75 = arith.constant 0.000000e+00 : f32
    %266 = vector.broadcast %cst_75 : f32 to vector<16x128xf32>
    %267 = arith.select %265, %263, %266 : vector<16x128xi1>, vector<16x128xf32>
    %268 = arith.index_cast %c5_i32 : i32 to index
    %c0_76 = arith.constant 0 : index
    %c0_77 = arith.constant 0 : index
    %269 = vector.load %arg7[%268, %c0_76, %c0_77] : memref<8x16x128xf32, #tpu.memory_space<vmem>>, vector<1x16x128xf32>
    %270 = vector.shape_cast %269 : vector<1x16x128xf32> to vector<16x128xf32>
    %271 = vector.shape_cast %267 : vector<16x128xf32> to vector<1x16x128xf32>
    tpu.vector_store %arg7[%268, %c0_76, %c0_77], %271 {strides = array<i32>} : memref<8x16x128xf32, #tpu.memory_space<vmem>>, vector<1x16x128xf32>,
    %272 = arith.select %265, %263, %229 : vector<16x128xi1>, vector<16x128xf32>
    %273 = arith.select %265, %261, %230 : vector<16x128xi1>, vector<16x128xf32>
    %c6_i32 = arith.constant 6 : i32
    %c8_i32_78 = arith.constant 8 : i32
    %274 = arith.muli %arg1, %c8_i32_78 : i32
    %275 = arith.addi %274, %c6_i32 : i32
    %276 = arith.index_cast %c6_i32 : i32 to index
    %c0_79 = arith.constant 0 : index
    %c0_80 = arith.constant 0 : index
    %277 = vector.load %arg10[%276, %c0_79, %c0_80] : memref<8x16x512xf32, #tpu.memory_space<vmem>>, vector<1x16x512xf32>
    %278 = vector.shape_cast %277 : vector<1x16x512xf32> to vector<16x512xf32>
    %279 = arith.truncf %272 : vector<16x128xf32> to vector<16x128xbf16>
    %cst_81 = arith.constant dense<0.000000e+00> : vector<16x512xf32>
    %280 = tpu.matmul %279, %13, %cst_81 {dimension_numbers = #tpu.dot_dimension_numbers<[1], [0], [0], [1], [0, 0, 1, 1], [], []>} : vector<16x128xbf16>, vector<128x512xbf16>, vector<16x512xf32> -> vector<16x512xf32>
    %281 = arith.addf %278, %280 : vector<16x512xf32>
    %282 = vector.extract_strided_slice %281 {offsets = [0, 0], sizes = [16, 128], strides = [1, 1]} : vector<16x512xf32> to vector<16x128xf32>
    %283 = arith.negf %282 : vector<16x128xf32>
    %284 = math.exp %283 : vector<16x128xf32>
    %cst_82 = arith.constant 1.000000e+00 : f32
    %285 = vector.broadcast %cst_82 : f32 to vector<16x128xf32>
    %286 = arith.addf %285, %284 : vector<16x128xf32>
    %287 = arith.divf %285, %286 : vector<16x128xf32>
    %288 = vector.extract_strided_slice %281 {offsets = [0, 128], sizes = [16, 128], strides = [1, 1]} : vector<16x512xf32> to vector<16x128xf32>
    %289 = arith.negf %288 : vector<16x128xf32>
    %290 = math.exp %289 : vector<16x128xf32>
    %cst_83 = arith.constant 1.000000e+00 : f32
    %291 = vector.broadcast %cst_83 : f32 to vector<16x128xf32>
    %292 = arith.addf %291, %290 : vector<16x128xf32>
    %293 = arith.divf %291, %292 : vector<16x128xf32>
    %294 = vector.extract_strided_slice %281 {offsets = [0, 256], sizes = [16, 128], strides = [1, 1]} : vector<16x512xf32> to vector<16x128xf32>
    %295 = math.tanh %294 : vector<16x128xf32>
    %296 = vector.extract_strided_slice %281 {offsets = [0, 384], sizes = [16, 128], strides = [1, 1]} : vector<16x512xf32> to vector<16x128xf32>
    %297 = arith.negf %296 : vector<16x128xf32>
    %298 = math.exp %297 : vector<16x128xf32>
    %cst_84 = arith.constant 1.000000e+00 : f32
    %299 = vector.broadcast %cst_84 : f32 to vector<16x128xf32>
    %300 = arith.addf %299, %298 : vector<16x128xf32>
    %301 = arith.divf %299, %300 : vector<16x128xf32>
    %302 = arith.mulf %293, %273 : vector<16x128xf32>
    %303 = arith.mulf %287, %295 : vector<16x128xf32>
    %304 = arith.addf %302, %303 : vector<16x128xf32>
    %305 = math.tanh %304 : vector<16x128xf32>
    %306 = arith.mulf %301, %305 : vector<16x128xf32>
    %307 = vector.broadcast %275 : i32 to vector<16x128xi32>
    %308 = arith.cmpi slt, %307, %12 : vector<16x128xi32>
    %cst_85 = arith.constant 0.000000e+00 : f32
    %309 = vector.broadcast %cst_85 : f32 to vector<16x128xf32>
    %310 = arith.select %308, %306, %309 : vector<16x128xi1>, vector<16x128xf32>
    %311 = arith.index_cast %c6_i32 : i32 to index
    %c0_86 = arith.constant 0 : index
    %c0_87 = arith.constant 0 : index
    %312 = vector.load %arg7[%311, %c0_86, %c0_87] : memref<8x16x128xf32, #tpu.memory_space<vmem>>, vector<1x16x128xf32>
    %313 = vector.shape_cast %312 : vector<1x16x128xf32> to vector<16x128xf32>
    %314 = vector.shape_cast %310 : vector<16x128xf32> to vector<1x16x128xf32>
    tpu.vector_store %arg7[%311, %c0_86, %c0_87], %314 {strides = array<i32>} : memref<8x16x128xf32, #tpu.memory_space<vmem>>, vector<1x16x128xf32>,
    %315 = arith.select %308, %306, %272 : vector<16x128xi1>, vector<16x128xf32>
    %316 = arith.select %308, %304, %273 : vector<16x128xi1>, vector<16x128xf32>
    %c7_i32 = arith.constant 7 : i32
    %c8_i32_88 = arith.constant 8 : i32
    %317 = arith.muli %arg1, %c8_i32_88 : i32
    %318 = arith.addi %317, %c7_i32 : i32
    %319 = arith.index_cast %c7_i32 : i32 to index
    %c0_89 = arith.constant 0 : index
    %c0_90 = arith.constant 0 : index
    %320 = vector.load %arg10[%319, %c0_89, %c0_90] : memref<8x16x512xf32, #tpu.memory_space<vmem>>, vector<1x16x512xf32>
    %321 = vector.shape_cast %320 : vector<1x16x512xf32> to vector<16x512xf32>
    %322 = arith.truncf %315 : vector<16x128xf32> to vector<16x128xbf16>
    %cst_91 = arith.constant dense<0.000000e+00> : vector<16x512xf32>
    %323 = tpu.matmul %322, %13, %cst_91 {dimension_numbers = #tpu.dot_dimension_numbers<[1], [0], [0], [1], [0, 0, 1, 1], [], []>} : vector<16x128xbf16>, vector<128x512xbf16>, vector<16x512xf32> -> vector<16x512xf32>
    %324 = arith.addf %321, %323 : vector<16x512xf32>
    %325 = vector.extract_strided_slice %324 {offsets = [0, 0], sizes = [16, 128], strides = [1, 1]} : vector<16x512xf32> to vector<16x128xf32>
    %326 = arith.negf %325 : vector<16x128xf32>
    %327 = math.exp %326 : vector<16x128xf32>
    %cst_92 = arith.constant 1.000000e+00 : f32
    %328 = vector.broadcast %cst_92 : f32 to vector<16x128xf32>
    %329 = arith.addf %328, %327 : vector<16x128xf32>
    %330 = arith.divf %328, %329 : vector<16x128xf32>
    %331 = vector.extract_strided_slice %324 {offsets = [0, 128], sizes = [16, 128], strides = [1, 1]} : vector<16x512xf32> to vector<16x128xf32>
    %332 = arith.negf %331 : vector<16x128xf32>
    %333 = math.exp %332 : vector<16x128xf32>
    %cst_93 = arith.constant 1.000000e+00 : f32
    %334 = vector.broadcast %cst_93 : f32 to vector<16x128xf32>
    %335 = arith.addf %334, %333 : vector<16x128xf32>
    %336 = arith.divf %334, %335 : vector<16x128xf32>
    %337 = vector.extract_strided_slice %324 {offsets = [0, 256], sizes = [16, 128], strides = [1, 1]} : vector<16x512xf32> to vector<16x128xf32>
    %338 = math.tanh %337 : vector<16x128xf32>
    %339 = vector.extract_strided_slice %324 {offsets = [0, 384], sizes = [16, 128], strides = [1, 1]} : vector<16x512xf32> to vector<16x128xf32>
    %340 = arith.negf %339 : vector<16x128xf32>
    %341 = math.exp %340 : vector<16x128xf32>
    %cst_94 = arith.constant 1.000000e+00 : f32
    %342 = vector.broadcast %cst_94 : f32 to vector<16x128xf32>
    %343 = arith.addf %342, %341 : vector<16x128xf32>
    %344 = arith.divf %342, %343 : vector<16x128xf32>
    %345 = arith.mulf %336, %316 : vector<16x128xf32>
    %346 = arith.mulf %330, %338 : vector<16x128xf32>
    %347 = arith.addf %345, %346 : vector<16x128xf32>
    %348 = math.tanh %347 : vector<16x128xf32>
    %349 = arith.mulf %344, %348 : vector<16x128xf32>
    %350 = vector.broadcast %318 : i32 to vector<16x128xi32>
    %351 = arith.cmpi slt, %350, %12 : vector<16x128xi32>
    %cst_95 = arith.constant 0.000000e+00 : f32
    %352 = vector.broadcast %cst_95 : f32 to vector<16x128xf32>
    %353 = arith.select %351, %349, %352 : vector<16x128xi1>, vector<16x128xf32>
    %354 = arith.index_cast %c7_i32 : i32 to index
    %c0_96 = arith.constant 0 : index
    %c0_97 = arith.constant 0 : index
    %355 = vector.load %arg7[%354, %c0_96, %c0_97] : memref<8x16x128xf32, #tpu.memory_space<vmem>>, vector<1x16x128xf32>
    %356 = vector.shape_cast %355 : vector<1x16x128xf32> to vector<16x128xf32>
    %357 = vector.shape_cast %353 : vector<16x128xf32> to vector<1x16x128xf32>
    tpu.vector_store %arg7[%354, %c0_96, %c0_97], %357 {strides = array<i32>} : memref<8x16x128xf32, #tpu.memory_space<vmem>>, vector<1x16x128xf32>,
    %358 = arith.select %351, %349, %315 : vector<16x128xi1>, vector<16x128xf32>
    %359 = arith.select %351, %347, %316 : vector<16x128xi1>, vector<16x128xf32>
    %c8_i32_98 = arith.constant 8 : i32
    %c0_99 = arith.constant 0 : index
    %c0_100 = arith.constant 0 : index
    %360 = vector.load %arg8[%c0_99, %c0_100] : memref<16x128xf32, #tpu.memory_space<vmem>>, vector<16x128xf32>
    tpu.vector_store %arg8[%c0_99, %c0_100], %358 {strides = array<i32>} : memref<16x128xf32, #tpu.memory_space<vmem>>, vector<16x128xf32>,
    %c0_101 = arith.constant 0 : index
    %c0_102 = arith.constant 0 : index
    %361 = vector.load %arg9[%c0_101, %c0_102] : memref<16x128xf32, #tpu.memory_space<vmem>>, vector<16x128xf32>
    tpu.vector_store %arg9[%c0_101, %c0_102], %359 {strides = array<i32>} : memref<16x128xf32, #tpu.memory_space<vmem>>, vector<16x128xf32>,
    return
  }
  func.func @transform_0(%arg0: i32, %arg1: i32) -> (i32, i32, i32) {
    %c0_i32 = arith.constant 0 : i32
    %c0_i32_0 = arith.constant 0 : i32
    return %arg1, %arg0, %c0_i32 : i32, i32, i32
  }
  func.func @transform_1(%arg0: i32, %arg1: i32) -> (i32, i32) {
    %c0_i32 = arith.constant 0 : i32
    %c0_i32_0 = arith.constant 0 : i32
    return %arg0, %c0_i32 : i32, i32
  }
  func.func @transform_2(%arg0: i32, %arg1: i32) -> (i32, i32) {
    %c0_i32 = arith.constant 0 : i32
    %c0_i32_0 = arith.constant 0 : i32
    %c0_i32_1 = arith.constant 0 : i32
    return %c0_i32, %c0_i32_0 : i32, i32
  }
  func.func @transform_3(%arg0: i32, %arg1: i32) -> (i32, i32) {
    %c0_i32 = arith.constant 0 : i32
    %c0_i32_0 = arith.constant 0 : i32
    %c0_i32_1 = arith.constant 0 : i32
    return %c0_i32, %c0_i32_0 : i32, i32
  }
  func.func @transform_4(%arg0: i32, %arg1: i32) -> (i32, i32) {
    %c0_i32 = arith.constant 0 : i32
    %c0_i32_0 = arith.constant 0 : i32
    %c0_i32_1 = arith.constant 0 : i32
    return %c0_i32, %c0_i32_0 : i32, i32
  }
  func.func @transform_5(%arg0: i32, %arg1: i32) -> (i32, i32, i32) {
    %c0_i32 = arith.constant 0 : i32
    %c0_i32_0 = arith.constant 0 : i32
    return %arg1, %arg0, %c0_i32 : i32, i32, i32
  }
  func.func @transform_6(%arg0: i32, %arg1: i32) -> (i32, i32) {
    %c0_i32 = arith.constant 0 : i32
    %c0_i32_0 = arith.constant 0 : i32
    return %arg0, %c0_i32 : i32, i32
  }
  func.func @transform_7(%arg0: i32, %arg1: i32) -> (i32, i32) {
    %c0_i32 = arith.constant 0 : i32
    %c0_i32_0 = arith.constant 0 : i32
    return %arg0, %c0_i32 : i32, i32
  }
}

</mosaic_0001>

<llo_original>
// kernel: tpu_custom_call.1
$region0: #{tpu_custom_call.1}
  #allocation0 [shape = 'u32[]', space=smem, size = 0x4, offset = 0x4, fixed_abs, tag = 'smem constant byte address 0x4 - core index']
  #allocation1 [shape = 'u32[144,128]{1,0:T(1,128)}', space=vmem, size = 0x12000, scoped, tag = 'internal scratch']
  #allocation2 [shape = 'f32[8,16,512]{2,1,0:T(8,128)}', space=vmem, size = 0x40000, scoped, tag = 'scratch operand']
  %s0 = inlined_call_operand.hbm [shape: bf16[8,16,32], index: 0, kind: input, shape index: {}]
  %s1 = inlined_call_operand.hbm [shape: s32[16,128], index: 1, kind: input, shape index: {}]
  %s2 = inlined_call_operand.hbm [shape: bf16[32,512], index: 2, kind: input, shape index: {}]
  %s3 = inlined_call_operand.vmem [shape: f32[1,512], index: 3, kind: input, shape index: {}]
  %s4 = inlined_call_operand.hbm [shape: bf16[128,512], index: 4, kind: input, shape index: {}]
  %s5 = inlined_call_operand.hbm [shape: f32[8,16,128], index: 5, kind: output, shape index: {0}]
  %s6 = inlined_call_operand.hbm [shape: f32[16,128], index: 6, kind: output, shape index: {1}]
  %s7 = inlined_call_operand.hbm [shape: f32[16,128], index: 7, kind: output, shape index: {2}]
  %8 = xla_tuple %s5, %s6, %s7
  %s9 = sld [smem:[#allocation0]]
  $region66: #{tpu_custom_call.1} parent=0
    _
  %s11 = ssub.s32 1, %s9
  %s12 = scalar_select 0, %s11, %s9
  $region1: #{tpu_custom_call.1} parent=0
    #allocation3 [shape = 'u8[32768]{0}', space=vmem, size = 0x8000, scoped, tag = 'input window, operand 0, single buffered']
    #allocation4 [shape = 's32[1]{0}', space=sflag, size = 0x4, scoped, tag = 'scoped memory for tpu_custom_call.1']
    #allocation5 [shape = 's32[1]{0}', space=sflag, size = 0x4, scoped, tag = 'scoped memory for tpu_custom_call.1']
    #allocation6 [shape = 'u8[8192]{0}', space=vmem, size = 0x2000, scoped, tag = 'input window, operand 1, single buffered']
    #allocation7 [shape = 's32[1]{0}', space=sflag, size = 0x4, scoped, tag = 'scoped memory for tpu_custom_call.1']
    #allocation8 [shape = 'u8[32768]{0}', space=vmem, size = 0x8000, scoped, tag = 'input window, operand 2, single buffered']
    #allocation9 [shape = 'u8[131072]{0}', space=vmem, size = 0x20000, scoped, tag = 'input window, operand 4, single buffered']
    #allocation10 [shape = 's32[1]{0}', space=sflag, size = 0x4, scoped, tag = 'scoped memory for tpu_custom_call.1']
    #allocation11 [shape = 'u8[65536]{0}', space=vmem, size = 0x10000, scoped, tag = 'output window, operand 0, single buffered']
    #allocation12 [shape = 'u8[8192]{0}', space=vmem, size = 0x2000, scoped, tag = 'output window, operand 1, single buffered']
    #allocation13 [shape = 's32[1]{0}', space=sflag, size = 0x4, scoped, tag = 'scoped memory for tpu_custom_call.1']
    #allocation14 [shape = 'u8[8192]{0}', space=vmem, size = 0x2000, scoped, tag = 'output window, operand 2, single buffered']
    %13 = vsyncpa [#allocation4], 0
    %14 = vsyncpa [#allocation7], 0
    %15 = vsyncpa [#allocation10], 0
    %16 = vsyncpa [#allocation5], 0
    %17 = vsyncpa [#allocation13], 0
    // Predicated region
    $region2: #{tpu_custom_call.1} parent=1 // pred_check
      _
    $region3: #{tpu_custom_call.1} parent=1 // pred_check_branch
      %19 = sbr.rel (0) target = $region5
    $region4: #{tpu_custom_call.1} parent=1 // pred_region
      %s21 = ssub.s32 1024, 1024
      %22 = vsyncadd [#allocation4], %s21
      %s23 = sshll.u32 [#allocation3], 4
      %s24 = int_to_ptr.vmem [resolvable:$true] %s23
      %29 = dma.hbm_to_vmem [thread:$0]  %s0, 1024, %s24, [#allocation4], 64, 64, 4
    $region5: #{tpu_custom_call.1} parent=1 // pred_fallthru
      _
    // Predicated region
    $region6: #{tpu_custom_call.1} parent=1 // pred_check
      _
    $region7: #{tpu_custom_call.1} parent=1 // pred_check_branch
      %31 = sbr.rel (0) target = $region9
    $region8: #{tpu_custom_call.1} parent=1 // pred_region
      %s33 = ssub.s32 256, 256
      %34 = vsyncadd [#allocation7], %s33
      %s35 = sshll.u32 [#allocation6], 4
      %s36 = int_to_ptr.vmem [resolvable:$true] %s35
      %41 = dma.hbm_to_vmem [thread:$0]  %s1, 256, %s36, [#allocation7], 128, 128, 8
    $region9: #{tpu_custom_call.1} parent=1 // pred_fallthru
      _
    // Predicated region
    $region10: #{tpu_custom_call.1} parent=1 // pred_check
      _
    $region11: #{tpu_custom_call.1} parent=1 // pred_check_branch
      %43 = sbr.rel (0) target = $region13
    $region12: #{tpu_custom_call.1} parent=1 // pred_region
      %s45 = ssub.s32 1024, 1024
      %46 = vsyncadd [#allocation7], %s45
      %s47 = sshll.u32 [#allocation8], 4
      %s48 = int_to_ptr.vmem [resolvable:$true] %s47
      %53 = dma.hbm_to_vmem [thread:$0]  %s2, 1024, %s48, [#allocation7], 256, 256, 16
    $region13: #{tpu_custom_call.1} parent=1 // pred_fallthru
      _
    // Predicated region
    $region14: #{tpu_custom_call.1} parent=1 // pred_check
      _
    $region15: #{tpu_custom_call.1} parent=1 // pred_check_branch
      %55 = sbr.rel (0) target = $region17
    $region16: #{tpu_custom_call.1} parent=1 // pred_region
      _
    $region17: #{tpu_custom_call.1} parent=1 // pred_fallthru
      _
    // Predicated region
    $region18: #{tpu_custom_call.1} parent=1 // pred_check
      _
    $region19: #{tpu_custom_call.1} parent=1 // pred_check_branch
      %57 = sbr.rel (0) target = $region21
    $region20: #{tpu_custom_call.1} parent=1 // pred_region
      %s59 = ssub.s32 4096, 4096
      %60 = vsyncadd [#allocation10], %s59
      %s61 = sshll.u32 [#allocation9], 4
      %s62 = int_to_ptr.vmem [resolvable:$true] %s61
      %67 = dma.hbm_to_vmem [thread:$0]  %s4, 4096, %s62, [#allocation10], 256, 256, 16
    $region21: #{tpu_custom_call.1} parent=1 // pred_fallthru
      _
    // Predicated region
    $region22: #{tpu_custom_call.1} parent=1 // pred_check
      _
    $region23: #{tpu_custom_call.1} parent=1 // pred_check_branch
      %69 = sbr.rel (0) target = $region25
    $region24: #{tpu_custom_call.1} parent=1 // pred_region
      %70 = dma.done [#allocation4], 1024
    $region25: #{tpu_custom_call.1} parent=1 // pred_fallthru
      _
    // Predicated region
    $region26: #{tpu_custom_call.1} parent=1 // pred_check
      _
    $region27: #{tpu_custom_call.1} parent=1 // pred_check_branch
      %72 = sbr.rel (0) target = $region29
    $region28: #{tpu_custom_call.1} parent=1 // pred_region
      %73 = dma.done [#allocation7], 256
    $region29: #{tpu_custom_call.1} parent=1 // pred_fallthru
      _
    // Predicated region
    $region30: #{tpu_custom_call.1} parent=1 // pred_check
      _
    $region31: #{tpu_custom_call.1} parent=1 // pred_check_branch
      %75 = sbr.rel (0) target = $region33
    $region32: #{tpu_custom_call.1} parent=1 // pred_region
      %76 = dma.done [#allocation7], 1024
    $region33: #{tpu_custom_call.1} parent=1 // pred_fallthru
      _
    // Predicated region
    $region34: #{tpu_custom_call.1} parent=1 // pred_check
      _
    $region35: #{tpu_custom_call.1} parent=1 // pred_check_branch
      %78 = sbr.rel (0) target = $region37
    $region36: #{tpu_custom_call.1} parent=1 // pred_region
      %79 = dma.done [#allocation10], 4096
    $region37: #{tpu_custom_call.1} parent=1 // pred_fallthru
      _
    %p81 = scmp.eq.s32.totalorder 0, 0
    // Predicated region
    $region38: #{tpu_custom_call.1} parent=1 // pred_check
      %p82 = pneg %p81
    $region39: #{tpu_custom_call.1} parent=1 // pred_check_branch
      %84 = sbr.rel (%p82) target = $region41
    $region40: #{tpu_custom_call.1} parent=1 // pred_region
      %85 = vst [vmem:[#allocation12] sm:$0xff] 0.0
      %86 = vst [vmem:[#allocation12 + $0x8] sm:$0xff] 0.0
      %87 = vst [vmem:[#allocation14] sm:$0xff] 0.0
      %88 = vst [vmem:[#allocation14 + $0x8] sm:$0xff] 0.0
    $region41: #{tpu_custom_call.1} parent=1 // pred_fallthru
      _
    %v89 = vld [vmem:[#allocation3] sm:$0xf]
    %v90 = vld [vmem:[#allocation3 + $0x4] sm:$0xf]
    %v91 = vld [vmem:[#allocation3 + $0x8] sm:$0xf]
    %v92 = vld [vmem:[#allocation3 + $0xc] sm:$0xf]
    %v93 = vld [vmem:[#allocation3 + $0x10] sm:$0xf]
    %v94 = vld [vmem:[#allocation3 + $0x14] sm:$0xf]
    %v95 = vld [vmem:[#allocation3 + $0x18] sm:$0xf]
    %v96 = vld [vmem:[#allocation3 + $0x1c] sm:$0xf]
    %v97 = vld [vmem:[#allocation3 + $0x20] sm:$0xf]
    %v98 = vld [vmem:[#allocation3 + $0x24] sm:$0xf]
    %v99 = vld [vmem:[#allocation3 + $0x28] sm:$0xf]
    %v100 = vld [vmem:[#allocation3 + $0x2c] sm:$0xf]
    %v101 = vld [vmem:[#allocation3 + $0x30] sm:$0xf]
    %v102 = vld [vmem:[#allocation3 + $0x34] sm:$0xf]
    %v103 = vld [vmem:[#allocation3 + $0x38] sm:$0xf]
    %v104 = vld [vmem:[#allocation3 + $0x3c] sm:$0xf]
    %v105 = vld [vmem:[#allocation8] sm:$0xff]
    %v106 = vld [vmem:[#allocation8 + $0x8] sm:$0xff]
    %v107 = vld [vmem:[#allocation8 + $0x10] sm:$0xff]
    %v108 = vld [vmem:[#allocation8 + $0x18] sm:$0xff]
    %v109 = vld [vmem:[#allocation8 + $0x20] sm:$0xff]
    %v110 = vld [vmem:[#allocation8 + $0x28] sm:$0xff]
    %v111 = vld [vmem:[#allocation8 + $0x30] sm:$0xff]
    %v112 = vld [vmem:[#allocation8 + $0x38] sm:$0xff]
    %v113 = vld [vmem:[%s3] sm:$0xf]
    %v115 = vlaneseq
    %v116 = vshrl.u32 %v115, 7
    %v117 = vsub.s32 0, %v116
    %v118 = vrot.slane %v113, %v117
    %v119 = vlaneseq
    %v120 = vshrl.u32 %v119, 7
    %v121 = vsub.s32 1, %v120
    %v122 = vrot.slane %v113, %v121
    %v123 = vlaneseq
    %v124 = vshrl.u32 %v123, 7
    %v125 = vsub.s32 2, %v124
    %v126 = vrot.slane %v113, %v125
    %v127 = vlaneseq
    %v128 = vshrl.u32 %v127, 7
    %v129 = vsub.s32 3, %v128
    %v130 = vrot.slane %v113, %v129
    %v151 = vunpack.c.l.b16 %v89
    %v152 = vunpack.c.l.b16 %v90
    %v153 = vunpack.c.l.b16 %v91
    %v154 = vunpack.c.l.b16 %v92
    %v155 = vunpack.c.l.b16 %v93
    %v156 = vunpack.c.l.b16 %v94
    %v157 = vunpack.c.l.b16 %v95
    %v158 = vunpack.c.l.b16 %v96
    %v159 = vunpack.c.l.b16 %v97
    %v160 = vunpack.c.l.b16 %v98
    %v161 = vunpack.c.l.b16 %v99
    %v162 = vunpack.c.l.b16 %v100
    %v163 = vunpack.c.l.b16 %v101
    %v164 = vunpack.c.l.b16 %v102
    %v165 = vunpack.c.l.b16 %v103
    %v166 = vunpack.c.l.b16 %v104
    %v167 = vpack.c.b16 %v152, %v151
    %v168 = vpack.c.b16 %v154, %v153
    %v169 = vpack.c.b16 %v156, %v155
    %v170 = vpack.c.b16 %v158, %v157
    %v171 = vpack.c.b16 %v160, %v159
    %v172 = vpack.c.b16 %v162, %v161
    %v173 = vpack.c.b16 %v164, %v163
    %v174 = vpack.c.b16 %v166, %v165
    %v183 = vunpack.c.l.b16 %v105
    %v184 = vunpack.c.h.b16 %v105
    %v185 = vunpack.c.l.b16 %v106
    %v186 = vunpack.c.h.b16 %v106
    %v187 = vunpack.c.l.b16 %v107
    %v188 = vunpack.c.h.b16 %v107
    %v189 = vunpack.c.l.b16 %v108
    %v190 = vunpack.c.h.b16 %v108
    %v191 = vunpack.c.l.b16 %v109
    %v192 = vunpack.c.h.b16 %v109
    %v193 = vunpack.c.l.b16 %v110
    %v194 = vunpack.c.h.b16 %v110
    %v195 = vunpack.c.l.b16 %v111
    %v196 = vunpack.c.h.b16 %v111
    %v197 = vunpack.c.l.b16 %v112
    %v198 = vunpack.c.h.b16 %v112
    %v199 = vpack.c.b16 %v187, %v183
    %v200 = vpack.c.b16 %v188, %v184
    %v201 = vpack.c.b16 %v189, %v185
    %v202 = vpack.c.b16 %v190, %v186
    %v203 = vpack.c.b16 %v195, %v191
    %v204 = vpack.c.b16 %v196, %v192
    %v205 = vpack.c.b16 %v197, %v193
    %v206 = vpack.c.b16 %v198, %v194
    %vm215 = vcmask 261120
    %v217 = vsel %vm215, %v167, 0
    %v220 = vsel %vm215, %v168, 0
    %v223 = vsel %vm215, %v169, 0
    %v226 = vsel %vm215, %v170, 0
    %v229 = vsel %vm215, %v171, 0
    %v232 = vsel %vm215, %v172, 0
    %v235 = vsel %vm215, %v173, 0
    %v238 = vsel %vm215, %v174, 0
    %240 = vmatprep.subr.bf16.mxu0 %v200
    %241 = vmatpush1.bf16.msra.mxu0 %v199
    %242 = vmatprep.subr.bf16.mxu0 %v204
    %243 = vmatpush1.bf16.msra.mxu0 %v203
    %244 = vmatprep.subr.bf16.mxu0 0
    %245 = vmatpush1.bf16.msra.mxu0 0
    %246 = vmatprep.subr.bf16.mxu0 0
    %247 = vmatpush1.bf16.msra.mxu0 0
    %248 = vmatprep.subr.bf16.mxu0 0
    %249 = vmatpush1.bf16.msra.mxu0 0
    %250 = vmatprep.subr.bf16.mxu0 0
    %251 = vmatpush1.bf16.msra.mxu0 0
    %252 = vmatprep.subr.bf16.mxu0 0
    %253 = vmatpush1.bf16.msra.mxu0 0
    %254 = vmatprep.subr.bf16.mxu0 0
    %255 = vmatpush1.bf16.msra.mxu0 0
    %256 = vmatprep.subr.bf16.mxu0 0
    %257 = vmatpush1.bf16.msra.mxu0 0
    %258 = vmatprep.subr.bf16.mxu0 0
    %259 = vmatpush1.bf16.msra.mxu0 0
    %260 = vmatprep.subr.bf16.mxu0 0
    %261 = vmatpush1.bf16.msra.mxu0 0
    %262 = vmatprep.subr.bf16.mxu0 0
    %263 = vmatpush1.bf16.msra.mxu0 0
    %264 = vmatprep.subr.bf16.mxu0 0
    %265 = vmatpush1.bf16.msra.mxu0 0
    %266 = vmatprep.subr.bf16.mxu0 0
    %267 = vmatpush1.bf16.msra.mxu0 0
    %268 = vmatprep.subr.bf16.mxu0 0
    %269 = vmatpush1.bf16.msra.mxu0 0
    %270 = vmatprep.subr.bf16.mxu0 0
    %271 = vmatpush1.bf16.msra.mxu0 0
    %272 = vmatprep.mubr.bf16.mxu0 0
    %273 = vmatmul.mubr.bf16.gmra.mrb[0].mxu0 %v217
    %v274 = vpop.f32.mrb[0].mxu0
    %v275 = vadd.f32 %v118, %v274
    %v276 = vpop.f32.mrb[0].mxu0
    %v277 = vadd.f32 %v122, %v276
    %v278 = vpop.f32.mrb[0].mxu0
    %v279 = vadd.f32 %v118, %v278
    %v280 = vpop.f32.mrb[0].mxu0
    %v281 = vadd.f32 %v122, %v280
    %282 = vmatprep.mubr.bf16.mxu0 0
    %283 = vmatmul.mubr.bf16.gmra.mrb[0].mxu0 %v220
    %v284 = vpop.f32.mrb[0].mxu0
    %v285 = vadd.f32 %v118, %v284
    %v286 = vpop.f32.mrb[0].mxu0
    %v287 = vadd.f32 %v122, %v286
    %v288 = vpop.f32.mrb[0].mxu0
    %v289 = vadd.f32 %v118, %v288
    %v290 = vpop.f32.mrb[0].mxu0
    %v291 = vadd.f32 %v122, %v290
    %292 = vmatprep.mubr.bf16.mxu0 0
    %293 = vmatmul.mubr.bf16.gmra.mrb[0].mxu0 %v223
    %v294 = vpop.f32.mrb[0].mxu0
    %v295 = vadd.f32 %v118, %v294
    %v296 = vpop.f32.mrb[0].mxu0
    %v297 = vadd.f32 %v122, %v296
    %v298 = vpop.f32.mrb[0].mxu0
    %v299 = vadd.f32 %v118, %v298
    %v300 = vpop.f32.mrb[0].mxu0
    %v301 = vadd.f32 %v122, %v300
    %302 = vmatprep.mubr.bf16.mxu0 0
    %303 = vmatmul.mubr.bf16.gmra.mrb[0].mxu0 %v226
    %v304 = vpop.f32.mrb[0].mxu0
    %v305 = vadd.f32 %v118, %v304
    %v306 = vpop.f32.mrb[0].mxu0
    %v307 = vadd.f32 %v122, %v306
    %v308 = vpop.f32.mrb[0].mxu0
    %v309 = vadd.f32 %v118, %v308
    %v310 = vpop.f32.mrb[0].mxu0
    %v311 = vadd.f32 %v122, %v310
    %312 = vmatprep.mubr.bf16.mxu0 0
    %313 = vmatmul.mubr.bf16.gmra.mrb[0].mxu0 %v229
    %v314 = vpop.f32.mrb[0].mxu0
    %v315 = vadd.f32 %v118, %v314
    %v316 = vpop.f32.mrb[0].mxu0
    %v317 = vadd.f32 %v122, %v316
    %v318 = vpop.f32.mrb[0].mxu0
    %v319 = vadd.f32 %v118, %v318
    %v320 = vpop.f32.mrb[0].mxu0
    %v321 = vadd.f32 %v122, %v320
    %322 = vmatprep.mubr.bf16.mxu0 0
    %323 = vmatmul.mubr.bf16.gmra.mrb[0].mxu0 %v232
    %v324 = vpop.f32.mrb[0].mxu0
    %v325 = vadd.f32 %v118, %v324
    %v326 = vpop.f32.mrb[0].mxu0
    %v327 = vadd.f32 %v122, %v326
    %v328 = vpop.f32.mrb[0].mxu0
    %v329 = vadd.f32 %v118, %v328
    %v330 = vpop.f32.mrb[0].mxu0
    %v331 = vadd.f32 %v122, %v330
    %332 = vmatprep.mubr.bf16.mxu0 0
    %333 = vmatmul.mubr.bf16.gmra.mrb[0].mxu0 %v235
    %v334 = vpop.f32.mrb[0].mxu0
    %v335 = vadd.f32 %v118, %v334
    %v336 = vpop.f32.mrb[0].mxu0
    %v337 = vadd.f32 %v122, %v336
    %v338 = vpop.f32.mrb[0].mxu0
    %v339 = vadd.f32 %v118, %v338
    %v340 = vpop.f32.mrb[0].mxu0
    %v341 = vadd.f32 %v122, %v340
    %342 = vmatprep.mubr.bf16.mxu0 0
    %343 = vmatmul.mubr.bf16.gmra.mrb[0].mxu0 %v238
    %v344 = vpop.f32.mrb[0].mxu0
    %v345 = vadd.f32 %v118, %v344
    %v346 = vpop.f32.mrb[0].mxu0
    %v347 = vadd.f32 %v122, %v346
    %v348 = vpop.f32.mrb[0].mxu0
    %v349 = vadd.f32 %v118, %v348
    %v350 = vpop.f32.mrb[0].mxu0
    %v351 = vadd.f32 %v122, %v350
    %352 = vdwg.mxu0
    %353 = vmatprep.subr.bf16.mxu0 %v202
    %354 = vmatpush1.bf16.msra.mxu0 %v201
    %355 = vmatprep.subr.bf16.mxu0 %v206
    %356 = vmatpush1.bf16.msra.mxu0 %v205
    %357 = vmatprep.subr.bf16.mxu0 0
    %358 = vmatpush1.bf16.msra.mxu0 0
    %359 = vmatprep.subr.bf16.mxu0 0
    %360 = vmatpush1.bf16.msra.mxu0 0
    %361 = vmatprep.subr.bf16.mxu0 0
    %362 = vmatpush1.bf16.msra.mxu0 0
    %363 = vmatprep.subr.bf16.mxu0 0
    %364 = vmatpush1.bf16.msra.mxu0 0
    %365 = vmatprep.subr.bf16.mxu0 0
    %366 = vmatpush1.bf16.msra.mxu0 0
    %367 = vmatprep.subr.bf16.mxu0 0
    %368 = vmatpush1.bf16.msra.mxu0 0
    %369 = vmatprep.subr.bf16.mxu0 0
    %370 = vmatpush1.bf16.msra.mxu0 0
    %371 = vmatprep.subr.bf16.mxu0 0
    %372 = vmatpush1.bf16.msra.mxu0 0
    %373 = vmatprep.subr.bf16.mxu0 0
    %374 = vmatpush1.bf16.msra.mxu0 0
    %375 = vmatprep.subr.bf16.mxu0 0
    %376 = vmatpush1.bf16.msra.mxu0 0
    %377 = vmatprep.subr.bf16.mxu0 0
    %378 = vmatpush1.bf16.msra.mxu0 0
    %379 = vmatprep.subr.bf16.mxu0 0
    %380 = vmatpush1.bf16.msra.mxu0 0
    %381 = vmatprep.subr.bf16.mxu0 0
    %382 = vmatpush1.bf16.msra.mxu0 0
    %383 = vmatprep.subr.bf16.mxu0 0
    %384 = vmatpush1.bf16.msra.mxu0 0
    %385 = vmatprep.mubr.bf16.mxu0 0
    %386 = vmatmul.mubr.bf16.gmra.mrb[0].mxu0 %v217
    %v387 = vpop.f32.mrb[0].mxu0
    %v388 = vadd.f32 %v126, %v387
    %v389 = vpop.f32.mrb[0].mxu0
    %v390 = vadd.f32 %v130, %v389
    %v391 = vpop.f32.mrb[0].mxu0
    %v392 = vadd.f32 %v126, %v391
    %v393 = vpop.f32.mrb[0].mxu0
    %v394 = vadd.f32 %v130, %v393
    %395 = vmatprep.mubr.bf16.mxu0 0
    %396 = vmatmul.mubr.bf16.gmra.mrb[0].mxu0 %v220
    %v397 = vpop.f32.mrb[0].mxu0
    %v398 = vadd.f32 %v126, %v397
    %v399 = vpop.f32.mrb[0].mxu0
    %v400 = vadd.f32 %v130, %v399
    %v401 = vpop.f32.mrb[0].mxu0
    %v402 = vadd.f32 %v126, %v401
    %v403 = vpop.f32.mrb[0].mxu0
    %v404 = vadd.f32 %v130, %v403
    %405 = vmatprep.mubr.bf16.mxu0 0
    %406 = vmatmul.mubr.bf16.gmra.mrb[0].mxu0 %v223
    %v407 = vpop.f32.mrb[0].mxu0
    %v408 = vadd.f32 %v126, %v407
    %v409 = vpop.f32.mrb[0].mxu0
    %v410 = vadd.f32 %v130, %v409
    %v411 = vpop.f32.mrb[0].mxu0
    %v412 = vadd.f32 %v126, %v411
    %v413 = vpop.f32.mrb[0].mxu0
    %v414 = vadd.f32 %v130, %v413
    %415 = vmatprep.mubr.bf16.mxu0 0
    %416 = vmatmul.mubr.bf16.gmra.mrb[0].mxu0 %v226
    %v417 = vpop.f32.mrb[0].mxu0
    %v418 = vadd.f32 %v126, %v417
    %v419 = vpop.f32.mrb[0].mxu0
    %v420 = vadd.f32 %v130, %v419
    %v421 = vpop.f32.mrb[0].mxu0
    %v422 = vadd.f32 %v126, %v421
    %v423 = vpop.f32.mrb[0].mxu0
    %v424 = vadd.f32 %v130, %v423
    %425 = vmatprep.mubr.bf16.mxu0 0
    %426 = vmatmul.mubr.bf16.gmra.mrb[0].mxu0 %v229
    %v427 = vpop.f32.mrb[0].mxu0
    %v428 = vadd.f32 %v126, %v427
    %v429 = vpop.f32.mrb[0].mxu0
    %v430 = vadd.f32 %v130, %v429
    %v431 = vpop.f32.mrb[0].mxu0
    %v432 = vadd.f32 %v126, %v431
    %v433 = vpop.f32.mrb[0].mxu0
    %v434 = vadd.f32 %v130, %v433
    %435 = vmatprep.mubr.bf16.mxu0 0
    %436 = vmatmul.mubr.bf16.gmra.mrb[0].mxu0 %v232
    %v437 = vpop.f32.mrb[0].mxu0
    %v438 = vadd.f32 %v126, %v437
    %v439 = vpop.f32.mrb[0].mxu0
    %v440 = vadd.f32 %v130, %v439
    %v441 = vpop.f32.mrb[0].mxu0
    %v442 = vadd.f32 %v126, %v441
    %v443 = vpop.f32.mrb[0].mxu0
    %v444 = vadd.f32 %v130, %v443
    %445 = vmatprep.mubr.bf16.mxu0 0
    %446 = vmatmul.mubr.bf16.gmra.mrb[0].mxu0 %v235
    %v447 = vpop.f32.mrb[0].mxu0
    %v448 = vadd.f32 %v126, %v447
    %v449 = vpop.f32.mrb[0].mxu0
    %v450 = vadd.f32 %v130, %v449
    %v451 = vpop.f32.mrb[0].mxu0
    %v452 = vadd.f32 %v126, %v451
    %v453 = vpop.f32.mrb[0].mxu0
    %v454 = vadd.f32 %v130, %v453
    %455 = vmatprep.mubr.bf16.mxu0 0
    %456 = vmatmul.mubr.bf16.gmra.mrb[0].mxu0 %v238
    %v457 = vpop.f32.mrb[0].mxu0
    %v458 = vadd.f32 %v126, %v457
    %v459 = vpop.f32.mrb[0].mxu0
    %v460 = vadd.f32 %v130, %v459
    %v461 = vpop.f32.mrb[0].mxu0
    %v462 = vadd.f32 %v126, %v461
    %v463 = vpop.f32.mrb[0].mxu0
    %v464 = vadd.f32 %v130, %v463
    %465 = vdwg.mxu0
    %466 = vst [vmem:[#allocation2] sm:$0xff] %v275
    %467 = vst [vmem:[#allocation2 + $0x8] sm:$0xff] %v277
    %468 = vst [vmem:[#allocation2 + $0x10] sm:$0xff] %v388
    %469 = vst [vmem:[#allocation2 + $0x18] sm:$0xff] %v390
    %470 = vst [vmem:[#allocation2 + $0x20] sm:$0xff] %v279
    %471 = vst [vmem:[#allocation2 + $0x28] sm:$0xff] %v281
    %472 = vst [vmem:[#allocation2 + $0x30] sm:$0xff] %v392
    %473 = vst [vmem:[#allocation2 + $0x38] sm:$0xff] %v394
    %474 = vst [vmem:[#allocation2 + $0x40] sm:$0xff] %v285
    %475 = vst [vmem:[#allocation2 + $0x48] sm:$0xff] %v287
    %476 = vst [vmem:[#allocation2 + $0x50] sm:$0xff] %v398
    %477 = vst [vmem:[#allocation2 + $0x58] sm:$0xff] %v400
    %478 = vst [vmem:[#allocation2 + $0x60] sm:$0xff] %v289
    %479 = vst [vmem:[#allocation2 + $0x68] sm:$0xff] %v291
    %480 = vst [vmem:[#allocation2 + $0x70] sm:$0xff] %v402
    %481 = vst [vmem:[#allocation2 + $0x78] sm:$0xff] %v404
    %482 = vst [vmem:[#allocation2 + $0x80] sm:$0xff] %v295
    %483 = vst [vmem:[#allocation2 + $0x88] sm:$0xff] %v297
    %484 = vst [vmem:[#allocation2 + $0x90] sm:$0xff] %v408
    %485 = vst [vmem:[#allocation2 + $0x98] sm:$0xff] %v410
    %486 = vst [vmem:[#allocation2 + $0xa0] sm:$0xff] %v299
    %487 = vst [vmem:[#allocation2 + $0xa8] sm:$0xff] %v301
    %488 = vst [vmem:[#allocation2 + $0xb0] sm:$0xff] %v412
    %489 = vst [vmem:[#allocation2 + $0xb8] sm:$0xff] %v414
    %490 = vst [vmem:[#allocation2 + $0xc0] sm:$0xff] %v305
    %491 = vst [vmem:[#allocation2 + $0xc8] sm:$0xff] %v307
    %492 = vst [vmem:[#allocation2 + $0xd0] sm:$0xff] %v418
    %493 = vst [vmem:[#allocation2 + $0xd8] sm:$0xff] %v420
    %494 = vst [vmem:[#allocation2 + $0xe0] sm:$0xff] %v309
    %495 = vst [vmem:[#allocation2 + $0xe8] sm:$0xff] %v311
    %496 = vst [vmem:[#allocation2 + $0xf0] sm:$0xff] %v422
    %497 = vst [vmem:[#allocation2 + $0xf8] sm:$0xff] %v424
    %498 = vst [vmem:[#allocation2 + $0x100] sm:$0xff] %v315
    %499 = vst [vmem:[#allocation2 + $0x108] sm:$0xff] %v317
    %500 = vst [vmem:[#allocation2 + $0x110] sm:$0xff] %v428
    %501 = vst [vmem:[#allocation2 + $0x118] sm:$0xff] %v430
    %502 = vst [vmem:[#allocation2 + $0x120] sm:$0xff] %v319
    %503 = vst [vmem:[#allocation2 + $0x128] sm:$0xff] %v321
    %504 = vst [vmem:[#allocation2 + $0x130] sm:$0xff] %v432
    %505 = vst [vmem:[#allocation2 + $0x138] sm:$0xff] %v434
    %506 = vst [vmem:[#allocation2 + $0x140] sm:$0xff] %v325
    %507 = vst [vmem:[#allocation2 + $0x148] sm:$0xff] %v327
    %508 = vst [vmem:[#allocation2 + $0x150] sm:$0xff] %v438
    %509 = vst [vmem:[#allocation2 + $0x158] sm:$0xff] %v440
    %510 = vst [vmem:[#allocation2 + $0x160] sm:$0xff] %v329
    %511 = vst [vmem:[#allocation2 + $0x168] sm:$0xff] %v331
    %512 = vst [vmem:[#allocation2 + $0x170] sm:$0xff] %v442
    %513 = vst [vmem:[#allocation2 + $0x178] sm:$0xff] %v444
    %514 = vst [vmem:[#allocation2 + $0x180] sm:$0xff] %v335
    %515 = vst [vmem:[#allocation2 + $0x188] sm:$0xff] %v337
    %516 = vst [vmem:[#allocation2 + $0x190] sm:$0xff] %v448
    %517 = vst [vmem:[#allocation2 + $0x198] sm:$0xff] %v450
    %518 = vst [vmem:[#allocation2 + $0x1a0] sm:$0xff] %v339
    %519 = vst [vmem:[#allocation2 + $0x1a8] sm:$0xff] %v341
    %520 = vst [vmem:[#allocation2 + $0x1b0] sm:$0xff] %v452
    %521 = vst [vmem:[#allocation2 + $0x1b8] sm:$0xff] %v454
    %522 = vst [vmem:[#allocation2 + $0x1c0] sm:$0xff] %v345
    %523 = vst [vmem:[#allocation2 + $0x1c8] sm:$0xff] %v347
    %524 = vst [vmem:[#allocation2 + $0x1d0] sm:$0xff] %v458
    %525 = vst [vmem:[#allocation2 + $0x1d8] sm:$0xff] %v460
    %526 = vst [vmem:[#allocation2 + $0x1e0] sm:$0xff] %v349
    %527 = vst [vmem:[#allocation2 + $0x1e8] sm:$0xff] %v351
    %528 = vst [vmem:[#allocation2 + $0x1f0] sm:$0xff] %v462
    %529 = vst [vmem:[#allocation2 + $0x1f8] sm:$0xff] %v464
    %v530 = vld [vmem:[#allocation6] sm:$0xff]
    %v531 = vld [vmem:[#allocation6 + $0x8] sm:$0xff]
    %v532 = vld [vmem:[#allocation9] sm:$0xff]
    %v533 = vld [vmem:[#allocation9 + $0x8] sm:$0xff]
    %v534 = vld [vmem:[#allocation9 + $0x10] sm:$0xff]
    %v535 = vld [vmem:[#allocation9 + $0x18] sm:$0xff]
    %v536 = vld [vmem:[#allocation9 + $0x20] sm:$0xff]
    %v537 = vld [vmem:[#allocation9 + $0x28] sm:$0xff]
    %v538 = vld [vmem:[#allocation9 + $0x30] sm:$0xff]
    %v539 = vld [vmem:[#allocation9 + $0x38] sm:$0xff]
    %v540 = vld [vmem:[#allocation9 + $0x40] sm:$0xff]
    %v541 = vld [vmem:[#allocation9 + $0x48] sm:$0xff]
    %v542 = vld [vmem:[#allocation9 + $0x50] sm:$0xff]
    %v543 = vld [vmem:[#allocation9 + $0x58] sm:$0xff]
    %v544 = vld [vmem:[#allocation9 + $0x60] sm:$0xff]
    %v545 = vld [vmem:[#allocation9 + $0x68] sm:$0xff]
    %v546 = vld [vmem:[#allocation9 + $0x70] sm:$0xff]
    %v547 = vld [vmem:[#allocation9 + $0x78] sm:$0xff]
    %v548 = vld [vmem:[#allocation9 + $0x80] sm:$0xff]
    %v549 = vld [vmem:[#allocation9 + $0x88] sm:$0xff]
    %v550 = vld [vmem:[#allocation9 + $0x90] sm:$0xff]
    %v551 = vld [vmem:[#allocation9 + $0x98] sm:$0xff]
    %v552 = vld [vmem:[#allocation9 + $0xa0] sm:$0xff]
    %v553 = vld [vmem:[#allocation9 + $0xa8] sm:$0xff]
    %v554 = vld [vmem:[#allocation9 + $0xb0] sm:$0xff]
    %v555 = vld [vmem:[#allocation9 + $0xb8] sm:$0xff]
    %v556 = vld [vmem:[#allocation9 + $0xc0] sm:$0xff]
    %v557 = vld [vmem:[#allocation9 + $0xc8] sm:$0xff]
    %v558 = vld [vmem:[#allocation9 + $0xd0] sm:$0xff]
    %v559 = vld [vmem:[#allocation9 + $0xd8] sm:$0xff]
    %v560 = vld [vmem:[#allocation9 + $0xe0] sm:$0xff]
    %v561 = vld [vmem:[#allocation9 + $0xe8] sm:$0xff]
    %v562 = vld [vmem:[#allocation9 + $0xf0] sm:$0xff]
    %v563 = vld [vmem:[#allocation9 + $0xf8] sm:$0xff]
    %v564 = vld [vmem:[#allocation12] sm:$0xff]
    %v565 = vld [vmem:[#allocation12 + $0x8] sm:$0xff]
    %v566 = vld [vmem:[#allocation14] sm:$0xff]
    %v567 = vld [vmem:[#allocation14 + $0x8] sm:$0xff]
    %s568 = smul.u32 0, 8
    %v569 = vld [vmem:[#allocation2] sm:$0xff]
    %v570 = vld [vmem:[#allocation2 + $0x8] sm:$0xff]
    %v571 = vld [vmem:[#allocation2 + $0x10] sm:$0xff]
    %v572 = vld [vmem:[#allocation2 + $0x18] sm:$0xff]
    %v573 = vld [vmem:[#allocation2 + $0x20] sm:$0xff]
    %v574 = vld [vmem:[#allocation2 + $0x28] sm:$0xff]
    %v575 = vld [vmem:[#allocation2 + $0x30] sm:$0xff]
    %v576 = vld [vmem:[#allocation2 + $0x38] sm:$0xff]
    %v577 = vpack.c.bf16 %v565, %v564
    %v610 = vunpack.c.l.b16 %v532
    %v611 = vunpack.c.h.b16 %v532
    %v612 = vunpack.c.l.b16 %v533
    %v613 = vunpack.c.h.b16 %v533
    %v614 = vunpack.c.l.b16 %v534
    %v615 = vunpack.c.h.b16 %v534
    %v616 = vunpack.c.l.b16 %v535
    %v617 = vunpack.c.h.b16 %v535
    %v618 = vunpack.c.l.b16 %v536
    %v619 = vunpack.c.h.b16 %v536
    %v620 = vunpack.c.l.b16 %v537
    %v621 = vunpack.c.h.b16 %v537
    %v622 = vunpack.c.l.b16 %v538
    %v623 = vunpack.c.h.b16 %v538
    %v624 = vunpack.c.l.b16 %v539
    %v625 = vunpack.c.h.b16 %v539
    %v626 = vunpack.c.l.b16 %v540
    %v627 = vunpack.c.h.b16 %v540
    %v628 = vunpack.c.l.b16 %v541
    %v629 = vunpack.c.h.b16 %v541
    %v630 = vunpack.c.l.b16 %v542
    %v631 = vunpack.c.h.b16 %v542
    %v632 = vunpack.c.l.b16 %v543
    %v633 = vunpack.c.h.b16 %v543
    %v634 = vunpack.c.l.b16 %v544
    %v635 = vunpack.c.h.b16 %v544
    %v636 = vunpack.c.l.b16 %v545
    %v637 = vunpack.c.h.b16 %v545
    %v638 = vunpack.c.l.b16 %v546
    %v639 = vunpack.c.h.b16 %v546
    %v640 = vunpack.c.l.b16 %v547
    %v641 = vunpack.c.h.b16 %v547
    %v642 = vunpack.c.l.b16 %v548
    %v643 = vunpack.c.h.b16 %v548
    %v644 = vunpack.c.l.b16 %v549
    %v645 = vunpack.c.h.b16 %v549
    %v646 = vunpack.c.l.b16 %v550
    %v647 = vunpack.c.h.b16 %v550
    %v648 = vunpack.c.l.b16 %v551
    %v649 = vunpack.c.h.b16 %v551
    %v650 = vunpack.c.l.b16 %v552
    %v651 = vunpack.c.h.b16 %v552
    %v652 = vunpack.c.l.b16 %v553
    %v653 = vunpack.c.h.b16 %v553
    %v654 = vunpack.c.l.b16 %v554
    %v655 = vunpack.c.h.b16 %v554
    %v656 = vunpack.c.l.b16 %v555
    %v657 = vunpack.c.h.b16 %v555
    %v658 = vunpack.c.l.b16 %v556
    %v659 = vunpack.c.h.b16 %v556
    %v660 = vunpack.c.l.b16 %v557
    %v661 = vunpack.c.h.b16 %v557
    %v662 = vunpack.c.l.b16 %v558
    %v663 = vunpack.c.h.b16 %v558
    %v664 = vunpack.c.l.b16 %v559
    %v665 = vunpack.c.h.b16 %v559
    %v666 = vunpack.c.l.b16 %v560
    %v667 = vunpack.c.h.b16 %v560
    %v668 = vunpack.c.l.b16 %v561
    %v669 = vunpack.c.h.b16 %v561
    %v670 = vunpack.c.l.b16 %v562
    %v671 = vunpack.c.h.b16 %v562
    %v672 = vunpack.c.l.b16 %v563
    %v673 = vunpack.c.h.b16 %v563
    %v674 = vpack.c.b16 %v614, %v610
    %v675 = vpack.c.b16 %v615, %v611
    %v676 = vpack.c.b16 %v616, %v612
    %v677 = vpack.c.b16 %v617, %v613
    %v678 = vpack.c.b16 %v622, %v618
    %v679 = vpack.c.b16 %v623, %v619
    %v680 = vpack.c.b16 %v624, %v620
    %v681 = vpack.c.b16 %v625, %v621
    %v682 = vpack.c.b16 %v630, %v626
    %v683 = vpack.c.b16 %v631, %v627
    %v684 = vpack.c.b16 %v632, %v628
    %v685 = vpack.c.b16 %v633, %v629
    %v686 = vpack.c.b16 %v638, %v634
    %v687 = vpack.c.b16 %v639, %v635
    %v688 = vpack.c.b16 %v640, %v636
    %v689 = vpack.c.b16 %v641, %v637
    %v690 = vpack.c.b16 %v646, %v642
    %v691 = vpack.c.b16 %v647, %v643
    %v692 = vpack.c.b16 %v648, %v644
    %v693 = vpack.c.b16 %v649, %v645
    %v694 = vpack.c.b16 %v654, %v650
    %v695 = vpack.c.b16 %v655, %v651
    %v696 = vpack.c.b16 %v656, %v652
    %v697 = vpack.c.b16 %v657, %v653
    %v698 = vpack.c.b16 %v662, %v658
    %v699 = vpack.c.b16 %v663, %v659
    %v700 = vpack.c.b16 %v664, %v660
    %v701 = vpack.c.b16 %v665, %v661
    %v702 = vpack.c.b16 %v670, %v666
    %v703 = vpack.c.b16 %v671, %v667
    %v704 = vpack.c.b16 %v672, %v668
    %v705 = vpack.c.b16 %v673, %v669
    %738 = vmatprep.subr.bf16.mxu0 %v675
    %739 = vmatpush1.bf16.msra.mxu0 %v674
    %740 = vmatprep.subr.bf16.mxu0 %v679
    %741 = vmatpush1.bf16.msra.mxu0 %v678
    %742 = vmatprep.subr.bf16.mxu0 %v683
    %743 = vmatpush1.bf16.msra.mxu0 %v682
    %744 = vmatprep.subr.bf16.mxu0 %v687
    %745 = vmatpush1.bf16.msra.mxu0 %v686
    %746 = vmatprep.subr.bf16.mxu0 %v691
    %747 = vmatpush1.bf16.msra.mxu0 %v690
    %748 = vmatprep.subr.bf16.mxu0 %v695
    %749 = vmatpush1.bf16.msra.mxu0 %v694
    %750 = vmatprep.subr.bf16.mxu0 %v699
    %751 = vmatpush1.bf16.msra.mxu0 %v698
    %752 = vmatprep.subr.bf16.mxu0 %v703
    %753 = vmatpush1.bf16.msra.mxu0 %v702
    %754 = vmatprep.subr.bf16.mxu0 0
    %755 = vmatpush1.bf16.msra.mxu0 0
    %756 = vmatprep.subr.bf16.mxu0 0
    %757 = vmatpush1.bf16.msra.mxu0 0
    %758 = vmatprep.subr.bf16.mxu0 0
    %759 = vmatpush1.bf16.msra.mxu0 0
    %760 = vmatprep.subr.bf16.mxu0 0
    %761 = vmatpush1.bf16.msra.mxu0 0
    %762 = vmatprep.subr.bf16.mxu0 0
    %763 = vmatpush1.bf16.msra.mxu0 0
    %764 = vmatprep.subr.bf16.mxu0 0
    %765 = vmatpush1.bf16.msra.mxu0 0
    %766 = vmatprep.subr.bf16.mxu0 0
    %767 = vmatpush1.bf16.msra.mxu0 0
    %768 = vmatprep.subr.bf16.mxu0 0
    %769 = vmatpush1.bf16.msra.mxu0 0
    %770 = vmatprep.mubr.bf16.mxu0 0
    %771 = vmatmul.mubr.bf16.gmra.mrb[0].mxu0 %v577
    %v772 = vpop.f32.mrb[0].mxu0
    %v773 = vadd.f32 0.0, %v772
    %v774 = vpop.f32.mrb[0].mxu0
    %v775 = vadd.f32 0.0, %v774
    %v776 = vpop.f32.mrb[0].mxu0
    %v777 = vadd.f32 0.0, %v776
    %v778 = vpop.f32.mrb[0].mxu0
    %v779 = vadd.f32 0.0, %v778
    %780 = vdwg.mxu0
    %781 = vmatprep.subr.bf16.mxu0 %v677
    %782 = vmatpush1.bf16.msra.mxu0 %v676
    %783 = vmatprep.subr.bf16.mxu0 %v681
    %784 = vmatpush1.bf16.msra.mxu0 %v680
    %785 = vmatprep.subr.bf16.mxu0 %v685
    %786 = vmatpush1.bf16.msra.mxu0 %v684
    %787 = vmatprep.subr.bf16.mxu0 %v689
    %788 = vmatpush1.bf16.msra.mxu0 %v688
    %789 = vmatprep.subr.bf16.mxu0 %v693
    %790 = vmatpush1.bf16.msra.mxu0 %v692
    %791 = vmatprep.subr.bf16.mxu0 %v697
    %792 = vmatpush1.bf16.msra.mxu0 %v696
    %793 = vmatprep.subr.bf16.mxu0 %v701
    %794 = vmatpush1.bf16.msra.mxu0 %v700
    %795 = vmatprep.subr.bf16.mxu0 %v705
    %796 = vmatpush1.bf16.msra.mxu0 %v704
    %797 = vmatprep.subr.bf16.mxu0 0
    %798 = vmatpush1.bf16.msra.mxu0 0
    %799 = vmatprep.subr.bf16.mxu0 0
    %800 = vmatpush1.bf16.msra.mxu0 0
    %801 = vmatprep.subr.bf16.mxu0 0
    %802 = vmatpush1.bf16.msra.mxu0 0
    %803 = vmatprep.subr.bf16.mxu0 0
    %804 = vmatpush1.bf16.msra.mxu0 0
    %805 = vmatprep.subr.bf16.mxu0 0
    %806 = vmatpush1.bf16.msra.mxu0 0
    %807 = vmatprep.subr.bf16.mxu0 0
    %808 = vmatpush1.bf16.msra.mxu0 0
    %809 = vmatprep.subr.bf16.mxu0 0
    %810 = vmatpush1.bf16.msra.mxu0 0
    %811 = vmatprep.subr.bf16.mxu0 0
    %812 = vmatpush1.bf16.msra.mxu0 0
    %813 = vmatprep.mubr.bf16.mxu0 0
    %814 = vmatmul.mubr.bf16.gmra.mrb[0].mxu0 %v577
    %v815 = vpop.f32.mrb[0].mxu0
    %v816 = vadd.f32 0.0, %v815
    %v817 = vpop.f32.mrb[0].mxu0
    %v818 = vadd.f32 0.0, %v817
    %v819 = vpop.f32.mrb[0].mxu0
    %v820 = vadd.f32 0.0, %v819
    %v821 = vpop.f32.mrb[0].mxu0
    %v822 = vadd.f32 0.0, %v821
    %823 = vdwg.mxu0
    %v824 = vadd.f32 %v569, %v773
    %v825 = vadd.f32 %v570, %v775
    %v826 = vadd.f32 %v571, %v816
    %v827 = vadd.f32 %v572, %v818
    %v828 = vadd.f32 %v573, %v777
    %v829 = vadd.f32 %v574, %v779
    %v830 = vadd.f32 %v575, %v820
    %v831 = vadd.f32 %v576, %v822
    %v832 = vxor.u32 %v824, 2147483648
    %v833 = vxor.u32 %v828, 2147483648
    %v834 = vmul.f32 %v832, 1.442695
    %v835 = vpow.pop %v834
    %v836 = vmul.f32 %v833, 1.442695
    %v837 = vpow.pop %v836
    %v838 = vadd.f32 %v835, 1.0
    %v839 = vadd.f32 %v837, 1.0
    %v840 = vrcp.pop %v838
    %v841 = vmul.f32 1.0, %v840
    %v842 = vrcp.pop %v839
    %v843 = vmul.f32 1.0, %v842
    %v844 = vxor.u32 %v825, 2147483648
    %v845 = vxor.u32 %v829, 2147483648
    %v846 = vmul.f32 %v844, 1.442695
    %v847 = vpow.pop %v846
    %v848 = vmul.f32 %v845, 1.442695
    %v849 = vpow.pop %v848
    %v850 = vadd.f32 %v847, 1.0
    %v851 = vadd.f32 %v849, 1.0
    %v852 = vrcp.pop %v850
    %v853 = vmul.f32 1.0, %v852
    %v854 = vrcp.pop %v851
    %v855 = vmul.f32 1.0, %v854
    %v856 = vtanh.pop %v826
    %v857 = vtanh.pop %v830
    %v858 = vxor.u32 %v827, 2147483648
    %v859 = vxor.u32 %v831, 2147483648
    %v860 = vmul.f32 %v858, 1.442695
    %v861 = vpow.pop %v860
    %v862 = vmul.f32 %v859, 1.442695
    %v863 = vpow.pop %v862
    %v864 = vadd.f32 %v861, 1.0
    %v865 = vadd.f32 %v863, 1.0
    %v866 = vrcp.pop %v864
    %v867 = vmul.f32 1.0, %v866
    %v868 = vrcp.pop %v865
    %v869 = vmul.f32 1.0, %v868
    %v870 = vmul.f32 %v853, %v566
    %v871 = vmul.f32 %v855, %v567
    %v872 = vmul.f32 %v841, %v856
    %v873 = vmul.f32 %v843, %v857
    %v874 = vadd.f32 %v870, %v872
    %v875 = vadd.f32 %v871, %v873
    %v876 = vtanh.pop %v874
    %v877 = vtanh.pop %v875
    %v878 = vmul.f32 %v867, %v876
    %v879 = vmul.f32 %v869, %v877
    %v880 = vstv %s568
    %vm881 = vcmp.lt.s32.totalorder %v880, %v530
    %vm882 = vcmp.lt.s32.totalorder %v880, %v531
    %v883 = vsel %vm881, %v878, 0.0
    %v884 = vsel %vm882, %v879, 0.0
    %885 = vst [vmem:[#allocation11] sm:$0xff] %v883
    %886 = vst [vmem:[#allocation11 + $0x8] sm:$0xff] %v884
    %v887 = vsel %vm881, %v878, %v564
    %v888 = vsel %vm882, %v879, %v565
    %v889 = vsel %vm881, %v874, %v566
    %v890 = vsel %vm882, %v875, %v567
    %s891 = sadd.s32 %s568, 1
    %s892 = scalar_lea.vmem [#allocation2], 64
    %v893 = vld [vmem:[%s892] sm:$0xff]
    %v894 = vld [vmem:[%s892 + $0x8] sm:$0xff]
    %v895 = vld [vmem:[%s892 + $0x10] sm:$0xff]
    %v896 = vld [vmem:[%s892 + $0x18] sm:$0xff]
    %v897 = vld [vmem:[%s892 + $0x20] sm:$0xff]
    %v898 = vld [vmem:[%s892 + $0x28] sm:$0xff]
    %v899 = vld [vmem:[%s892 + $0x30] sm:$0xff]
    %v900 = vld [vmem:[%s892 + $0x38] sm:$0xff]
    %v901 = vpack.c.bf16 %v888, %v887
    %902 = vmatprep.subr.bf16.mxu0 %v675
    %903 = vmatpush1.bf16.msra.mxu0 %v674
    %904 = vmatprep.subr.bf16.mxu0 %v679
    %905 = vmatpush1.bf16.msra.mxu0 %v678
    %906 = vmatprep.subr.bf16.mxu0 %v683
    %907 = vmatpush1.bf16.msra.mxu0 %v682
    %908 = vmatprep.subr.bf16.mxu0 %v687
    %909 = vmatpush1.bf16.msra.mxu0 %v686
    %910 = vmatprep.subr.bf16.mxu0 %v691
    %911 = vmatpush1.bf16.msra.mxu0 %v690
    %912 = vmatprep.subr.bf16.mxu0 %v695
    %913 = vmatpush1.bf16.msra.mxu0 %v694
    %914 = vmatprep.subr.bf16.mxu0 %v699
    %915 = vmatpush1.bf16.msra.mxu0 %v698
    %916 = vmatprep.subr.bf16.mxu0 %v703
    %917 = vmatpush1.bf16.msra.mxu0 %v702
    %918 = vmatprep.subr.bf16.mxu0 0
    %919 = vmatpush1.bf16.msra.mxu0 0
    %920 = vmatprep.subr.bf16.mxu0 0
    %921 = vmatpush1.bf16.msra.mxu0 0
    %922 = vmatprep.subr.bf16.mxu0 0
    %923 = vmatpush1.bf16.msra.mxu0 0
    %924 = vmatprep.subr.bf16.mxu0 0
    %925 = vmatpush1.bf16.msra.mxu0 0
    %926 = vmatprep.subr.bf16.mxu0 0
    %927 = vmatpush1.bf16.msra.mxu0 0
    %928 = vmatprep.subr.bf16.mxu0 0
    %929 = vmatpush1.bf16.msra.mxu0 0
    %930 = vmatprep.subr.bf16.mxu0 0
    %931 = vmatpush1.bf16.msra.mxu0 0
    %932 = vmatprep.subr.bf16.mxu0 0
    %933 = vmatpush1.bf16.msra.mxu0 0
    %934 = vmatprep.mubr.bf16.mxu0 0
    %935 = vmatmul.mubr.bf16.gmra.mrb[0].mxu0 %v901
    %v936 = vpop.f32.mrb[0].mxu0
    %v937 = vadd.f32 0.0, %v936
    %v938 = vpop.f32.mrb[0].mxu0
    %v939 = vadd.f32 0.0, %v938
    %v940 = vpop.f32.mrb[0].mxu0
    %v941 = vadd.f32 0.0, %v940
    %v942 = vpop.f32.mrb[0].mxu0
    %v943 = vadd.f32 0.0, %v942
    %944 = vdwg.mxu0
    %945 = vmatprep.subr.bf16.mxu0 %v677
    %946 = vmatpush1.bf16.msra.mxu0 %v676
    %947 = vmatprep.subr.bf16.mxu0 %v681
    %948 = vmatpush1.bf16.msra.mxu0 %v680
    %949 = vmatprep.subr.bf16.mxu0 %v685
    %950 = vmatpush1.bf16.msra.mxu0 %v684
    %951 = vmatprep.subr.bf16.mxu0 %v689
    %952 = vmatpush1.bf16.msra.mxu0 %v688
    %953 = vmatprep.subr.bf16.mxu0 %v693
    %954 = vmatpush1.bf16.msra.mxu0 %v692
    %955 = vmatprep.subr.bf16.mxu0 %v697
    %956 = vmatpush1.bf16.msra.mxu0 %v696
    %957 = vmatprep.subr.bf16.mxu0 %v701
    %958 = vmatpush1.bf16.msra.mxu0 %v700
    %959 = vmatprep.subr.bf16.mxu0 %v705
    %960 = vmatpush1.bf16.msra.mxu0 %v704
    %961 = vmatprep.subr.bf16.mxu0 0
    %962 = vmatpush1.bf16.msra.mxu0 0
    %963 = vmatprep.subr.bf16.mxu0 0
    %964 = vmatpush1.bf16.msra.mxu0 0
    %965 = vmatprep.subr.bf16.mxu0 0
    %966 = vmatpush1.bf16.msra.mxu0 0
    %967 = vmatprep.subr.bf16.mxu0 0
    %968 = vmatpush1.bf16.msra.mxu0 0
    %969 = vmatprep.subr.bf16.mxu0 0
    %970 = vmatpush1.bf16.msra.mxu0 0
    %971 = vmatprep.subr.bf16.mxu0 0
    %972 = vmatpush1.bf16.msra.mxu0 0
    %973 = vmatprep.subr.bf16.mxu0 0
    %974 = vmatpush1.bf16.msra.mxu0 0
    %975 = vmatprep.subr.bf16.mxu0 0
    %976 = vmatpush1.bf16.msra.mxu0 0
    %977 = vmatprep.mubr.bf16.mxu0 0
    %978 = vmatmul.mubr.bf16.gmra.mrb[0].mxu0 %v901
    %v979 = vpop.f32.mrb[0].mxu0
    %v980 = vadd.f32 0.0, %v979
    %v981 = vpop.f32.mrb[0].mxu0
    %v982 = vadd.f32 0.0, %v981
    %v983 = vpop.f32.mrb[0].mxu0
    %v984 = vadd.f32 0.0, %v983
    %v985 = vpop.f32.mrb[0].mxu0
    %v986 = vadd.f32 0.0, %v985
    %987 = vdwg.mxu0
    %v988 = vadd.f32 %v893, %v937
    %v989 = vadd.f32 %v894, %v939
    %v990 = vadd.f32 %v895, %v980
    %v991 = vadd.f32 %v896, %v982
    %v992 = vadd.f32 %v897, %v941
    %v993 = vadd.f32 %v898, %v943
    %v994 = vadd.f32 %v899, %v984
    %v995 = vadd.f32 %v900, %v986
    %v996 = vxor.u32 %v988, 2147483648
    %v997 = vxor.u32 %v992, 2147483648
    %v998 = vmul.f32 %v996, 1.442695
    %v999 = vpow.pop %v998
    %v1000 = vmul.f32 %v997, 1.442695
    %v1001 = vpow.pop %v1000
    %v1002 = vadd.f32 %v999, 1.0
    %v1003 = vadd.f32 %v1001, 1.0
    %v1004 = vrcp.pop %v1002
    %v1005 = vmul.f32 1.0, %v1004
    %v1006 = vrcp.pop %v1003
    %v1007 = vmul.f32 1.0, %v1006
    %v1008 = vxor.u32 %v989, 2147483648
    %v1009 = vxor.u32 %v993, 2147483648
    %v1010 = vmul.f32 %v1008, 1.442695
    %v1011 = vpow.pop %v1010
    %v1012 = vmul.f32 %v1009, 1.442695
    %v1013 = vpow.pop %v1012
    %v1014 = vadd.f32 %v1011, 1.0
    %v1015 = vadd.f32 %v1013, 1.0
    %v1016 = vrcp.pop %v1014
    %v1017 = vmul.f32 1.0, %v1016
    %v1018 = vrcp.pop %v1015
    %v1019 = vmul.f32 1.0, %v1018
    %v1020 = vtanh.pop %v990
    %v1021 = vtanh.pop %v994
    %v1022 = vxor.u32 %v991, 2147483648
    %v1023 = vxor.u32 %v995, 2147483648
    %v1024 = vmul.f32 %v1022, 1.442695
    %v1025 = vpow.pop %v1024
    %v1026 = vmul.f32 %v1023, 1.442695
    %v1027 = vpow.pop %v1026
    %v1028 = vadd.f32 %v1025, 1.0
    %v1029 = vadd.f32 %v1027, 1.0
    %v1030 = vrcp.pop %v1028
    %v1031 = vmul.f32 1.0, %v1030
    %v1032 = vrcp.pop %v1029
    %v1033 = vmul.f32 1.0, %v1032
    %v1034 = vmul.f32 %v1017, %v889
    %v1035 = vmul.f32 %v1019, %v890
    %v1036 = vmul.f32 %v1005, %v1020
    %v1037 = vmul.f32 %v1007, %v1021
    %v1038 = vadd.f32 %v1034, %v1036
    %v1039 = vadd.f32 %v1035, %v1037
    %v1040 = vtanh.pop %v1038
    %v1041 = vtanh.pop %v1039
    %v1042 = vmul.f32 %v1031, %v1040
    %v1043 = vmul.f32 %v1033, %v1041
    %v1044 = vstv %s891
    %vm1045 = vcmp.lt.s32.totalorder %v1044, %v530
    %vm1046 = vcmp.lt.s32.totalorder %v1044, %v531
    %v1047 = vsel %vm1045, %v1042, 0.0
    %v1048 = vsel %vm1046, %v1043, 0.0
    %s1049 = scalar_lea.vmem [#allocation11], 16
    %1050 = vst [vmem:[%s1049] sm:$0xff] %v1047
    %1051 = vst [vmem:[%s1049 + $0x8] sm:$0xff] %v1048
    %v1052 = vsel %vm1045, %v1042, %v887
    %v1053 = vsel %vm1046, %v1043, %v888
    %v1054 = vsel %vm1045, %v1038, %v889
    %v1055 = vsel %vm1046, %v1039, %v890
    %s1056 = sadd.s32 %s568, 2
    %s1057 = scalar_lea.vmem [#allocation2], 128
    %v1058 = vld [vmem:[%s1057] sm:$0xff]
    %v1059 = vld [vmem:[%s1057 + $0x8] sm:$0xff]
    %v1060 = vld [vmem:[%s1057 + $0x10] sm:$0xff]
    %v1061 = vld [vmem:[%s1057 + $0x18] sm:$0xff]
    %v1062 = vld [vmem:[%s1057 + $0x20] sm:$0xff]
    %v1063 = vld [vmem:[%s1057 + $0x28] sm:$0xff]
    %v1064 = vld [vmem:[%s1057 + $0x30] sm:$0xff]
    %v1065 = vld [vmem:[%s1057 + $0x38] sm:$0xff]
    %v1066 = vpack.c.bf16 %v1053, %v1052
    %1067 = vmatprep.subr.bf16.mxu0 %v675
    %1068 = vmatpush1.bf16.msra.mxu0 %v674
    %1069 = vmatprep.subr.bf16.mxu0 %v679
    %1070 = vmatpush1.bf16.msra.mxu0 %v678
    %1071 = vmatprep.subr.bf16.mxu0 %v683
    %1072 = vmatpush1.bf16.msra.mxu0 %v682
    %1073 = vmatprep.subr.bf16.mxu0 %v687
    %1074 = vmatpush1.bf16.msra.mxu0 %v686
    %1075 = vmatprep.subr.bf16.mxu0 %v691
    %1076 = vmatpush1.bf16.msra.mxu0 %v690
    %1077 = vmatprep.subr.bf16.mxu0 %v695
    %1078 = vmatpush1.bf16.msra.mxu0 %v694
    %1079 = vmatprep.subr.bf16.mxu0 %v699
    %1080 = vmatpush1.bf16.msra.mxu0 %v698
    %1081 = vmatprep.subr.bf16.mxu0 %v703
    %1082 = vmatpush1.bf16.msra.mxu0 %v702
    %1083 = vmatprep.subr.bf16.mxu0 0
    %1084 = vmatpush1.bf16.msra.mxu0 0
    %1085 = vmatprep.subr.bf16.mxu0 0
    %1086 = vmatpush1.bf16.msra.mxu0 0
    %1087 = vmatprep.subr.bf16.mxu0 0
    %1088 = vmatpush1.bf16.msra.mxu0 0
    %1089 = vmatprep.subr.bf16.mxu0 0
    %1090 = vmatpush1.bf16.msra.mxu0 0
    %1091 = vmatprep.subr.bf16.mxu0 0
    %1092 = vmatpush1.bf16.msra.mxu0 0
    %1093 = vmatprep.subr.bf16.mxu0 0
    %1094 = vmatpush1.bf16.msra.mxu0 0
    %1095 = vmatprep.subr.bf16.mxu0 0
    %1096 = vmatpush1.bf16.msra.mxu0 0
    %1097 = vmatprep.subr.bf16.mxu0 0
    %1098 = vmatpush1.bf16.msra.mxu0 0
    %1099 = vmatprep.mubr.bf16.mxu0 0
    %1100 = vmatmul.mubr.bf16.gmra.mrb[0].mxu0 %v1066
    %v1101 = vpop.f32.mrb[0].mxu0
    %v1102 = vadd.f32 0.0, %v1101
    %v1103 = vpop.f32.mrb[0].mxu0
    %v1104 = vadd.f32 0.0, %v1103
    %v1105 = vpop.f32.mrb[0].mxu0
    %v1106 = vadd.f32 0.0, %v1105
    %v1107 = vpop.f32.mrb[0].mxu0
    %v1108 = vadd.f32 0.0, %v1107
    %1109 = vdwg.mxu0
    %1110 = vmatprep.subr.bf16.mxu0 %v677
    %1111 = vmatpush1.bf16.msra.mxu0 %v676
    %1112 = vmatprep.subr.bf16.mxu0 %v681
    %1113 = vmatpush1.bf16.msra.mxu0 %v680
    %1114 = vmatprep.subr.bf16.mxu0 %v685
    %1115 = vmatpush1.bf16.msra.mxu0 %v684
    %1116 = vmatprep.subr.bf16.mxu0 %v689
    %1117 = vmatpush1.bf16.msra.mxu0 %v688
    %1118 = vmatprep.subr.bf16.mxu0 %v693
    %1119 = vmatpush1.bf16.msra.mxu0 %v692
    %1120 = vmatprep.subr.bf16.mxu0 %v697
    %1121 = vmatpush1.bf16.msra.mxu0 %v696
    %1122 = vmatprep.subr.bf16.mxu0 %v701
    %1123 = vmatpush1.bf16.msra.mxu0 %v700
    %1124 = vmatprep.subr.bf16.mxu0 %v705
    %1125 = vmatpush1.bf16.msra.mxu0 %v704
    %1126 = vmatprep.subr.bf16.mxu0 0
    %1127 = vmatpush1.bf16.msra.mxu0 0
    %1128 = vmatprep.subr.bf16.mxu0 0
    %1129 = vmatpush1.bf16.msra.mxu0 0
    %1130 = vmatprep.subr.bf16.mxu0 0
    %1131 = vmatpush1.bf16.msra.mxu0 0
    %1132 = vmatprep.subr.bf16.mxu0 0
    %1133 = vmatpush1.bf16.msra.mxu0 0
    %1134 = vmatprep.subr.bf16.mxu0 0
    %1135 = vmatpush1.bf16.msra.mxu0 0
    %1136 = vmatprep.subr.bf16.mxu0 0
    %1137 = vmatpush1.bf16.msra.mxu0 0
    %1138 = vmatprep.subr.bf16.mxu0 0
    %1139 = vmatpush1.bf16.msra.mxu0 0
    %1140 = vmatprep.subr.bf16.mxu0 0
    %1141 = vmatpush1.bf16.msra.mxu0 0
    %1142 = vmatprep.mubr.bf16.mxu0 0
    %1143 = vmatmul.mubr.bf16.gmra.mrb[0].mxu0 %v1066
    %v1144 = vpop.f32.mrb[0].mxu0
    %v1145 = vadd.f32 0.0, %v1144
    %v1146 = vpop.f32.mrb[0].mxu0
    %v1147 = vadd.f32 0.0, %v1146
    %v1148 = vpop.f32.mrb[0].mxu0
    %v1149 = vadd.f32 0.0, %v1148
    %v1150 = vpop.f32.mrb[0].mxu0
    %v1151 = vadd.f32 0.0, %v1150
    %1152 = vdwg.mxu0
    %v1153 = vadd.f32 %v1058, %v1102
    %v1154 = vadd.f32 %v1059, %v1104
    %v1155 = vadd.f32 %v1060, %v1145
    %v1156 = vadd.f32 %v1061, %v1147
    %v1157 = vadd.f32 %v1062, %v1106
    %v1158 = vadd.f32 %v1063, %v1108
    %v1159 = vadd.f32 %v1064, %v1149
    %v1160 = vadd.f32 %v1065, %v1151
    %v1161 = vxor.u32 %v1153, 2147483648
    %v1162 = vxor.u32 %v1157, 2147483648
    %v1163 = vmul.f32 %v1161, 1.442695
    %v1164 = vpow.pop %v1163
    %v1165 = vmul.f32 %v1162, 1.442695
    %v1166 = vpow.pop %v1165
    %v1167 = vadd.f32 %v1164, 1.0
    %v1168 = vadd.f32 %v1166, 1.0
    %v1169 = vrcp.pop %v1167
    %v1170 = vmul.f32 1.0, %v1169
    %v1171 = vrcp.pop %v1168
    %v1172 = vmul.f32 1.0, %v1171
    %v1173 = vxor.u32 %v1154, 2147483648
    %v1174 = vxor.u32 %v1158, 2147483648
    %v1175 = vmul.f32 %v1173, 1.442695
    %v1176 = vpow.pop %v1175
    %v1177 = vmul.f32 %v1174, 1.442695
    %v1178 = vpow.pop %v1177
    %v1179 = vadd.f32 %v1176, 1.0
    %v1180 = vadd.f32 %v1178, 1.0
    %v1181 = vrcp.pop %v1179
    %v1182 = vmul.f32 1.0, %v1181
    %v1183 = vrcp.pop %v1180
    %v1184 = vmul.f32 1.0, %v1183
    %v1185 = vtanh.pop %v1155
    %v1186 = vtanh.pop %v1159
    %v1187 = vxor.u32 %v1156, 2147483648
    %v1188 = vxor.u32 %v1160, 2147483648
    %v1189 = vmul.f32 %v1187, 1.442695
    %v1190 = vpow.pop %v1189
    %v1191 = vmul.f32 %v1188, 1.442695
    %v1192 = vpow.pop %v1191
    %v1193 = vadd.f32 %v1190, 1.0
    %v1194 = vadd.f32 %v1192, 1.0
    %v1195 = vrcp.pop %v1193
    %v1196 = vmul.f32 1.0, %v1195
    %v1197 = vrcp.pop %v1194
    %v1198 = vmul.f32 1.0, %v1197
    %v1199 = vmul.f32 %v1182, %v1054
    %v1200 = vmul.f32 %v1184, %v1055
    %v1201 = vmul.f32 %v1170, %v1185
    %v1202 = vmul.f32 %v1172, %v1186
    %v1203 = vadd.f32 %v1199, %v1201
    %v1204 = vadd.f32 %v1200, %v1202
    %v1205 = vtanh.pop %v1203
    %v1206 = vtanh.pop %v1204
    %v1207 = vmul.f32 %v1196, %v1205
    %v1208 = vmul.f32 %v1198, %v1206
    %v1209 = vstv %s1056
    %vm1210 = vcmp.lt.s32.totalorder %v1209, %v530
    %vm1211 = vcmp.lt.s32.totalorder %v1209, %v531
    %v1212 = vsel %vm1210, %v1207, 0.0
    %v1213 = vsel %vm1211, %v1208, 0.0
    %s1214 = scalar_lea.vmem [#allocation11], 32
    %1215 = vst [vmem:[%s1214] sm:$0xff] %v1212
    %1216 = vst [vmem:[%s1214 + $0x8] sm:$0xff] %v1213
    %v1217 = vsel %vm1210, %v1207, %v1052
    %v1218 = vsel %vm1211, %v1208, %v1053
    %v1219 = vsel %vm1210, %v1203, %v1054
    %v1220 = vsel %vm1211, %v1204, %v1055
    %s1221 = sadd.s32 %s568, 3
    %s1222 = scalar_lea.vmem [#allocation2], 192
    %v1223 = vld [vmem:[%s1222] sm:$0xff]
    %v1224 = vld [vmem:[%s1222 + $0x8] sm:$0xff]
    %v1225 = vld [vmem:[%s1222 + $0x10] sm:$0xff]
    %v1226 = vld [vmem:[%s1222 + $0x18] sm:$0xff]
    %v1227 = vld [vmem:[%s1222 + $0x20] sm:$0xff]
    %v1228 = vld [vmem:[%s1222 + $0x28] sm:$0xff]
    %v1229 = vld [vmem:[%s1222 + $0x30] sm:$0xff]
    %v1230 = vld [vmem:[%s1222 + $0x38] sm:$0xff]
    %v1231 = vpack.c.bf16 %v1218, %v1217
    %1232 = vmatprep.subr.bf16.mxu0 %v675
    %1233 = vmatpush1.bf16.msra.mxu0 %v674
    %1234 = vmatprep.subr.bf16.mxu0 %v679
    %1235 = vmatpush1.bf16.msra.mxu0 %v678
    %1236 = vmatprep.subr.bf16.mxu0 %v683
    %1237 = vmatpush1.bf16.msra.mxu0 %v682
    %1238 = vmatprep.subr.bf16.mxu0 %v687
    %1239 = vmatpush1.bf16.msra.mxu0 %v686
    %1240 = vmatprep.subr.bf16.mxu0 %v691
    %1241 = vmatpush1.bf16.msra.mxu0 %v690
    %1242 = vmatprep.subr.bf16.mxu0 %v695
    %1243 = vmatpush1.bf16.msra.mxu0 %v694
    %1244 = vmatprep.subr.bf16.mxu0 %v699
    %1245 = vmatpush1.bf16.msra.mxu0 %v698
    %1246 = vmatprep.subr.bf16.mxu0 %v703
    %1247 = vmatpush1.bf16.msra.mxu0 %v702
    %1248 = vmatprep.subr.bf16.mxu0 0
    %1249 = vmatpush1.bf16.msra.mxu0 0
    %1250 = vmatprep.subr.bf16.mxu0 0
    %1251 = vmatpush1.bf16.msra.mxu0 0
    %1252 = vmatprep.subr.bf16.mxu0 0
    %1253 = vmatpush1.bf16.msra.mxu0 0
    %1254 = vmatprep.subr.bf16.mxu0 0
    %1255 = vmatpush1.bf16.msra.mxu0 0
    %1256 = vmatprep.subr.bf16.mxu0 0
    %1257 = vmatpush1.bf16.msra.mxu0 0
    %1258 = vmatprep.subr.bf16.mxu0 0
    %1259 = vmatpush1.bf16.msra.mxu0 0
    %1260 = vmatprep.subr.bf16.mxu0 0
    %1261 = vmatpush1.bf16.msra.mxu0 0
    %1262 = vmatprep.subr.bf16.mxu0 0
    %1263 = vmatpush1.bf16.msra.mxu0 0
    %1264 = vmatprep.mubr.bf16.mxu0 0
    %1265 = vmatmul.mubr.bf16.gmra.mrb[0].mxu0 %v1231
    %v1266 = vpop.f32.mrb[0].mxu0
    %v1267 = vadd.f32 0.0, %v1266
    %v1268 = vpop.f32.mrb[0].mxu0
    %v1269 = vadd.f32 0.0, %v1268
    %v1270 = vpop.f32.mrb[0].mxu0
    %v1271 = vadd.f32 0.0, %v1270
    %v1272 = vpop.f32.mrb[0].mxu0
    %v1273 = vadd.f32 0.0, %v1272
    %1274 = vdwg.mxu0
    %1275 = vmatprep.subr.bf16.mxu0 %v677
    %1276 = vmatpush1.bf16.msra.mxu0 %v676
    %1277 = vmatprep.subr.bf16.mxu0 %v681
    %1278 = vmatpush1.bf16.msra.mxu0 %v680
    %1279 = vmatprep.subr.bf16.mxu0 %v685
    %1280 = vmatpush1.bf16.msra.mxu0 %v684
    %1281 = vmatprep.subr.bf16.mxu0 %v689
    %1282 = vmatpush1.bf16.msra.mxu0 %v688
    %1283 = vmatprep.subr.bf16.mxu0 %v693
    %1284 = vmatpush1.bf16.msra.mxu0 %v692
    %1285 = vmatprep.subr.bf16.mxu0 %v697
    %1286 = vmatpush1.bf16.msra.mxu0 %v696
    %1287 = vmatprep.subr.bf16.mxu0 %v701
    %1288 = vmatpush1.bf16.msra.mxu0 %v700
    %1289 = vmatprep.subr.bf16.mxu0 %v705
    %1290 = vmatpush1.bf16.msra.mxu0 %v704
    %1291 = vmatprep.subr.bf16.mxu0 0
    %1292 = vmatpush1.bf16.msra.mxu0 0
    %1293 = vmatprep.subr.bf16.mxu0 0
    %1294 = vmatpush1.bf16.msra.mxu0 0
    %1295 = vmatprep.subr.bf16.mxu0 0
    %1296 = vmatpush1.bf16.msra.mxu0 0
    %1297 = vmatprep.subr.bf16.mxu0 0
    %1298 = vmatpush1.bf16.msra.mxu0 0
    %1299 = vmatprep.subr.bf16.mxu0 0
    %1300 = vmatpush1.bf16.msra.mxu0 0
    %1301 = vmatprep.subr.bf16.mxu0 0
    %1302 = vmatpush1.bf16.msra.mxu0 0
    %1303 = vmatprep.subr.bf16.mxu0 0
    %1304 = vmatpush1.bf16.msra.mxu0 0
    %1305 = vmatprep.subr.bf16.mxu0 0
    %1306 = vmatpush1.bf16.msra.mxu0 0
    %1307 = vmatprep.mubr.bf16.mxu0 0
    %1308 = vmatmul.mubr.bf16.gmra.mrb[0].mxu0 %v1231
    %v1309 = vpop.f32.mrb[0].mxu0
    %v1310 = vadd.f32 0.0, %v1309
    %v1311 = vpop.f32.mrb[0].mxu0
    %v1312 = vadd.f32 0.0, %v1311
    %v1313 = vpop.f32.mrb[0].mxu0
    %v1314 = vadd.f32 0.0, %v1313
    %v1315 = vpop.f32.mrb[0].mxu0
    %v1316 = vadd.f32 0.0, %v1315
    %1317 = vdwg.mxu0
    %v1318 = vadd.f32 %v1223, %v1267
    %v1319 = vadd.f32 %v1224, %v1269
    %v1320 = vadd.f32 %v1225, %v1310
    %v1321 = vadd.f32 %v1226, %v1312
    %v1322 = vadd.f32 %v1227, %v1271
    %v1323 = vadd.f32 %v1228, %v1273
    %v1324 = vadd.f32 %v1229, %v1314
    %v1325 = vadd.f32 %v1230, %v1316
    %v1326 = vxor.u32 %v1318, 2147483648
    %v1327 = vxor.u32 %v1322, 2147483648
    %v1328 = vmul.f32 %v1326, 1.442695
    %v1329 = vpow.pop %v1328
    %v1330 = vmul.f32 %v1327, 1.442695
    %v1331 = vpow.pop %v1330
    %v1332 = vadd.f32 %v1329, 1.0
    %v1333 = vadd.f32 %v1331, 1.0
    %v1334 = vrcp.pop %v1332
    %v1335 = vmul.f32 1.0, %v1334
    %v1336 = vrcp.pop %v1333
    %v1337 = vmul.f32 1.0, %v1336
    %v1338 = vxor.u32 %v1319, 2147483648
    %v1339 = vxor.u32 %v1323, 2147483648
    %v1340 = vmul.f32 %v1338, 1.442695
    %v1341 = vpow.pop %v1340
    %v1342 = vmul.f32 %v1339, 1.442695
    %v1343 = vpow.pop %v1342
    %v1344 = vadd.f32 %v1341, 1.0
    %v1345 = vadd.f32 %v1343, 1.0
    %v1346 = vrcp.pop %v1344
    %v1347 = vmul.f32 1.0, %v1346
    %v1348 = vrcp.pop %v1345
    %v1349 = vmul.f32 1.0, %v1348
    %v1350 = vtanh.pop %v1320
    %v1351 = vtanh.pop %v1324
    %v1352 = vxor.u32 %v1321, 2147483648
    %v1353 = vxor.u32 %v1325, 2147483648
    %v1354 = vmul.f32 %v1352, 1.442695
    %v1355 = vpow.pop %v1354
    %v1356 = vmul.f32 %v1353, 1.442695
    %v1357 = vpow.pop %v1356
    %v1358 = vadd.f32 %v1355, 1.0
    %v1359 = vadd.f32 %v1357, 1.0
    %v1360 = vrcp.pop %v1358
    %v1361 = vmul.f32 1.0, %v1360
    %v1362 = vrcp.pop %v1359
    %v1363 = vmul.f32 1.0, %v1362
    %v1364 = vmul.f32 %v1347, %v1219
    %v1365 = vmul.f32 %v1349, %v1220
    %v1366 = vmul.f32 %v1335, %v1350
    %v1367 = vmul.f32 %v1337, %v1351
    %v1368 = vadd.f32 %v1364, %v1366
    %v1369 = vadd.f32 %v1365, %v1367
    %v1370 = vtanh.pop %v1368
    %v1371 = vtanh.pop %v1369
    %v1372 = vmul.f32 %v1361, %v1370
    %v1373 = vmul.f32 %v1363, %v1371
    %v1374 = vstv %s1221
    %vm1375 = vcmp.lt.s32.totalorder %v1374, %v530
    %vm1376 = vcmp.lt.s32.totalorder %v1374, %v531
    %v1377 = vsel %vm1375, %v1372, 0.0
    %v1378 = vsel %vm1376, %v1373, 0.0
    %s1379 = scalar_lea.vmem [#allocation11], 48
    %1380 = vst [vmem:[%s1379] sm:$0xff] %v1377
    %1381 = vst [vmem:[%s1379 + $0x8] sm:$0xff] %v1378
    %v1382 = vsel %vm1375, %v1372, %v1217
    %v1383 = vsel %vm1376, %v1373, %v1218
    %v1384 = vsel %vm1375, %v1368, %v1219
    %v1385 = vsel %vm1376, %v1369, %v1220
    %s1386 = sadd.s32 %s568, 4
    %s1387 = scalar_lea.vmem [#allocation2], 256
    %v1388 = vld [vmem:[%s1387] sm:$0xff]
    %v1389 = vld [vmem:[%s1387 + $0x8] sm:$0xff]
    %v1390 = vld [vmem:[%s1387 + $0x10] sm:$0xff]
    %v1391 = vld [vmem:[%s1387 + $0x18] sm:$0xff]
    %v1392 = vld [vmem:[%s1387 + $0x20] sm:$0xff]
    %v1393 = vld [vmem:[%s1387 + $0x28] sm:$0xff]
    %v1394 = vld [vmem:[%s1387 + $0x30] sm:$0xff]
    %v1395 = vld [vmem:[%s1387 + $0x38] sm:$0xff]
    %v1396 = vpack.c.bf16 %v1383, %v1382
    %1397 = vmatprep.subr.bf16.mxu0 %v675
    %1398 = vmatpush1.bf16.msra.mxu0 %v674
    %1399 = vmatprep.subr.bf16.mxu0 %v679
    %1400 = vmatpush1.bf16.msra.mxu0 %v678
    %1401 = vmatprep.subr.bf16.mxu0 %v683
    %1402 = vmatpush1.bf16.msra.mxu0 %v682
    %1403 = vmatprep.subr.bf16.mxu0 %v687
    %1404 = vmatpush1.bf16.msra.mxu0 %v686
    %1405 = vmatprep.subr.bf16.mxu0 %v691
    %1406 = vmatpush1.bf16.msra.mxu0 %v690
    %1407 = vmatprep.subr.bf16.mxu0 %v695
    %1408 = vmatpush1.bf16.msra.mxu0 %v694
    %1409 = vmatprep.subr.bf16.mxu0 %v699
    %1410 = vmatpush1.bf16.msra.mxu0 %v698
    %1411 = vmatprep.subr.bf16.mxu0 %v703
    %1412 = vmatpush1.bf16.msra.mxu0 %v702
    %1413 = vmatprep.subr.bf16.mxu0 0
    %1414 = vmatpush1.bf16.msra.mxu0 0
    %1415 = vmatprep.subr.bf16.mxu0 0
    %1416 = vmatpush1.bf16.msra.mxu0 0
    %1417 = vmatprep.subr.bf16.mxu0 0
    %1418 = vmatpush1.bf16.msra.mxu0 0
    %1419 = vmatprep.subr.bf16.mxu0 0
    %1420 = vmatpush1.bf16.msra.mxu0 0
    %1421 = vmatprep.subr.bf16.mxu0 0
    %1422 = vmatpush1.bf16.msra.mxu0 0
    %1423 = vmatprep.subr.bf16.mxu0 0
    %1424 = vmatpush1.bf16.msra.mxu0 0
    %1425 = vmatprep.subr.bf16.mxu0 0
    %1426 = vmatpush1.bf16.msra.mxu0 0
    %1427 = vmatprep.subr.bf16.mxu0 0
    %1428 = vmatpush1.bf16.msra.mxu0 0
    %1429 = vmatprep.mubr.bf16.mxu0 0
    %1430 = vmatmul.mubr.bf16.gmra.mrb[0].mxu0 %v1396
    %v1431 = vpop.f32.mrb[0].mxu0
    %v1432 = vadd.f32 0.0, %v1431
    %v1433 = vpop.f32.mrb[0].mxu0
    %v1434 = vadd.f32 0.0, %v1433
    %v1435 = vpop.f32.mrb[0].mxu0
    %v1436 = vadd.f32 0.0, %v1435
    %v1437 = vpop.f32.mrb[0].mxu0
    %v1438 = vadd.f32 0.0, %v1437
    %1439 = vdwg.mxu0
    %1440 = vmatprep.subr.bf16.mxu0 %v677
    %1441 = vmatpush1.bf16.msra.mxu0 %v676
    %1442 = vmatprep.subr.bf16.mxu0 %v681
    %1443 = vmatpush1.bf16.msra.mxu0 %v680
    %1444 = vmatprep.subr.bf16.mxu0 %v685
    %1445 = vmatpush1.bf16.msra.mxu0 %v684
    %1446 = vmatprep.subr.bf16.mxu0 %v689
    %1447 = vmatpush1.bf16.msra.mxu0 %v688
    %1448 = vmatprep.subr.bf16.mxu0 %v693
    %1449 = vmatpush1.bf16.msra.mxu0 %v692
    %1450 = vmatprep.subr.bf16.mxu0 %v697
    %1451 = vmatpush1.bf16.msra.mxu0 %v696
    %1452 = vmatprep.subr.bf16.mxu0 %v701
    %1453 = vmatpush1.bf16.msra.mxu0 %v700
    %1454 = vmatprep.subr.bf16.mxu0 %v705
    %1455 = vmatpush1.bf16.msra.mxu0 %v704
    %1456 = vmatprep.subr.bf16.mxu0 0
    %1457 = vmatpush1.bf16.msra.mxu0 0
    %1458 = vmatprep.subr.bf16.mxu0 0
    %1459 = vmatpush1.bf16.msra.mxu0 0
    %1460 = vmatprep.subr.bf16.mxu0 0
    %1461 = vmatpush1.bf16.msra.mxu0 0
    %1462 = vmatprep.subr.bf16.mxu0 0
    %1463 = vmatpush1.bf16.msra.mxu0 0
    %1464 = vmatprep.subr.bf16.mxu0 0
    %1465 = vmatpush1.bf16.msra.mxu0 0
    %1466 = vmatprep.subr.bf16.mxu0 0
    %1467 = vmatpush1.bf16.msra.mxu0 0
    %1468 = vmatprep.subr.bf16.mxu0 0
    %1469 = vmatpush1.bf16.msra.mxu0 0
    %1470 = vmatprep.subr.bf16.mxu0 0
    %1471 = vmatpush1.bf16.msra.mxu0 0
    %1472 = vmatprep.mubr.bf16.mxu0 0
    %1473 = vmatmul.mubr.bf16.gmra.mrb[0].mxu0 %v1396
    %v1474 = vpop.f32.mrb[0].mxu0
    %v1475 = vadd.f32 0.0, %v1474
    %v1476 = vpop.f32.mrb[0].mxu0
    %v1477 = vadd.f32 0.0, %v1476
    %v1478 = vpop.f32.mrb[0].mxu0
    %v1479 = vadd.f32 0.0, %v1478
    %v1480 = vpop.f32.mrb[0].mxu0
    %v1481 = vadd.f32 0.0, %v1480
    %1482 = vdwg.mxu0
    %v1483 = vadd.f32 %v1388, %v1432
    %v1484 = vadd.f32 %v1389, %v1434
    %v1485 = vadd.f32 %v1390, %v1475
    %v1486 = vadd.f32 %v1391, %v1477
    %v1487 = vadd.f32 %v1392, %v1436
    %v1488 = vadd.f32 %v1393, %v1438
    %v1489 = vadd.f32 %v1394, %v1479
    %v1490 = vadd.f32 %v1395, %v1481
    %v1491 = vxor.u32 %v1483, 2147483648
    %v1492 = vxor.u32 %v1487, 2147483648
    %v1493 = vmul.f32 %v1491, 1.442695
    %v1494 = vpow.pop %v1493
    %v1495 = vmul.f32 %v1492, 1.442695
    %v1496 = vpow.pop %v1495
    %v1497 = vadd.f32 %v1494, 1.0
    %v1498 = vadd.f32 %v1496, 1.0
    %v1499 = vrcp.pop %v1497
    %v1500 = vmul.f32 1.0, %v1499
    %v1501 = vrcp.pop %v1498
    %v1502 = vmul.f32 1.0, %v1501
    %v1503 = vxor.u32 %v1484, 2147483648
    %v1504 = vxor.u32 %v1488, 2147483648
    %v1505 = vmul.f32 %v1503, 1.442695
    %v1506 = vpow.pop %v1505
    %v1507 = vmul.f32 %v1504, 1.442695
    %v1508 = vpow.pop %v1507
    %v1509 = vadd.f32 %v1506, 1.0
    %v1510 = vadd.f32 %v1508, 1.0
    %v1511 = vrcp.pop %v1509
    %v1512 = vmul.f32 1.0, %v1511
    %v1513 = vrcp.pop %v1510
    %v1514 = vmul.f32 1.0, %v1513
    %v1515 = vtanh.pop %v1485
    %v1516 = vtanh.pop %v1489
    %v1517 = vxor.u32 %v1486, 2147483648
    %v1518 = vxor.u32 %v1490, 2147483648
    %v1519 = vmul.f32 %v1517, 1.442695
    %v1520 = vpow.pop %v1519
    %v1521 = vmul.f32 %v1518, 1.442695
    %v1522 = vpow.pop %v1521
    %v1523 = vadd.f32 %v1520, 1.0
    %v1524 = vadd.f32 %v1522, 1.0
    %v1525 = vrcp.pop %v1523
    %v1526 = vmul.f32 1.0, %v1525
    %v1527 = vrcp.pop %v1524
    %v1528 = vmul.f32 1.0, %v1527
    %v1529 = vmul.f32 %v1512, %v1384
    %v1530 = vmul.f32 %v1514, %v1385
    %v1531 = vmul.f32 %v1500, %v1515
    %v1532 = vmul.f32 %v1502, %v1516
    %v1533 = vadd.f32 %v1529, %v1531
    %v1534 = vadd.f32 %v1530, %v1532
    %v1535 = vtanh.pop %v1533
    %v1536 = vtanh.pop %v1534
    %v1537 = vmul.f32 %v1526, %v1535
    %v1538 = vmul.f32 %v1528, %v1536
    %v1539 = vstv %s1386
    %vm1540 = vcmp.lt.s32.totalorder %v1539, %v530
    %vm1541 = vcmp.lt.s32.totalorder %v1539, %v531
    %v1542 = vsel %vm1540, %v1537, 0.0
    %v1543 = vsel %vm1541, %v1538, 0.0
    %s1544 = scalar_lea.vmem [#allocation11], 64
    %1545 = vst [vmem:[%s1544] sm:$0xff] %v1542
    %1546 = vst [vmem:[%s1544 + $0x8] sm:$0xff] %v1543
    %v1547 = vsel %vm1540, %v1537, %v1382
    %v1548 = vsel %vm1541, %v1538, %v1383
    %v1549 = vsel %vm1540, %v1533, %v1384
    %v1550 = vsel %vm1541, %v1534, %v1385
    %s1551 = sadd.s32 %s568, 5
    %s1552 = scalar_lea.vmem [#allocation2], 320
    %v1553 = vld [vmem:[%s1552] sm:$0xff]
    %v1554 = vld [vmem:[%s1552 + $0x8] sm:$0xff]
    %v1555 = vld [vmem:[%s1552 + $0x10] sm:$0xff]
    %v1556 = vld [vmem:[%s1552 + $0x18] sm:$0xff]
    %v1557 = vld [vmem:[%s1552 + $0x20] sm:$0xff]
    %v1558 = vld [vmem:[%s1552 + $0x28] sm:$0xff]
    %v1559 = vld [vmem:[%s1552 + $0x30] sm:$0xff]
    %v1560 = vld [vmem:[%s1552 + $0x38] sm:$0xff]
    %v1561 = vpack.c.bf16 %v1548, %v1547
    %1562 = vmatprep.subr.bf16.mxu0 %v675
    %1563 = vmatpush1.bf16.msra.mxu0 %v674
    %1564 = vmatprep.subr.bf16.mxu0 %v679
    %1565 = vmatpush1.bf16.msra.mxu0 %v678
    %1566 = vmatprep.subr.bf16.mxu0 %v683
    %1567 = vmatpush1.bf16.msra.mxu0 %v682
    %1568 = vmatprep.subr.bf16.mxu0 %v687
    %1569 = vmatpush1.bf16.msra.mxu0 %v686
    %1570 = vmatprep.subr.bf16.mxu0 %v691
    %1571 = vmatpush1.bf16.msra.mxu0 %v690
    %1572 = vmatprep.subr.bf16.mxu0 %v695
    %1573 = vmatpush1.bf16.msra.mxu0 %v694
    %1574 = vmatprep.subr.bf16.mxu0 %v699
    %1575 = vmatpush1.bf16.msra.mxu0 %v698
    %1576 = vmatprep.subr.bf16.mxu0 %v703
    %1577 = vmatpush1.bf16.msra.mxu0 %v702
    %1578 = vmatprep.subr.bf16.mxu0 0
    %1579 = vmatpush1.bf16.msra.mxu0 0
    %1580 = vmatprep.subr.bf16.mxu0 0
    %1581 = vmatpush1.bf16.msra.mxu0 0
    %1582 = vmatprep.subr.bf16.mxu0 0
    %1583 = vmatpush1.bf16.msra.mxu0 0
    %1584 = vmatprep.subr.bf16.mxu0 0
    %1585 = vmatpush1.bf16.msra.mxu0 0
    %1586 = vmatprep.subr.bf16.mxu0 0
    %1587 = vmatpush1.bf16.msra.mxu0 0
    %1588 = vmatprep.subr.bf16.mxu0 0
    %1589 = vmatpush1.bf16.msra.mxu0 0
    %1590 = vmatprep.subr.bf16.mxu0 0
    %1591 = vmatpush1.bf16.msra.mxu0 0
    %1592 = vmatprep.subr.bf16.mxu0 0
    %1593 = vmatpush1.bf16.msra.mxu0 0
    %1594 = vmatprep.mubr.bf16.mxu0 0
    %1595 = vmatmul.mubr.bf16.gmra.mrb[0].mxu0 %v1561
    %v1596 = vpop.f32.mrb[0].mxu0
    %v1597 = vadd.f32 0.0, %v1596
    %v1598 = vpop.f32.mrb[0].mxu0
    %v1599 = vadd.f32 0.0, %v1598
    %v1600 = vpop.f32.mrb[0].mxu0
    %v1601 = vadd.f32 0.0, %v1600
    %v1602 = vpop.f32.mrb[0].mxu0
    %v1603 = vadd.f32 0.0, %v1602
    %1604 = vdwg.mxu0
    %1605 = vmatprep.subr.bf16.mxu0 %v677
    %1606 = vmatpush1.bf16.msra.mxu0 %v676
    %1607 = vmatprep.subr.bf16.mxu0 %v681
    %1608 = vmatpush1.bf16.msra.mxu0 %v680
    %1609 = vmatprep.subr.bf16.mxu0 %v685
    %1610 = vmatpush1.bf16.msra.mxu0 %v684
    %1611 = vmatprep.subr.bf16.mxu0 %v689
    %1612 = vmatpush1.bf16.msra.mxu0 %v688
    %1613 = vmatprep.subr.bf16.mxu0 %v693
    %1614 = vmatpush1.bf16.msra.mxu0 %v692
    %1615 = vmatprep.subr.bf16.mxu0 %v697
    %1616 = vmatpush1.bf16.msra.mxu0 %v696
    %1617 = vmatprep.subr.bf16.mxu0 %v701
    %1618 = vmatpush1.bf16.msra.mxu0 %v700
    %1619 = vmatprep.subr.bf16.mxu0 %v705
    %1620 = vmatpush1.bf16.msra.mxu0 %v704
    %1621 = vmatprep.subr.bf16.mxu0 0
    %1622 = vmatpush1.bf16.msra.mxu0 0
    %1623 = vmatprep.subr.bf16.mxu0 0
    %1624 = vmatpush1.bf16.msra.mxu0 0
    %1625 = vmatprep.subr.bf16.mxu0 0
    %1626 = vmatpush1.bf16.msra.mxu0 0
    %1627 = vmatprep.subr.bf16.mxu0 0
    %1628 = vmatpush1.bf16.msra.mxu0 0
    %1629 = vmatprep.subr.bf16.mxu0 0
    %1630 = vmatpush1.bf16.msra.mxu0 0
    %1631 = vmatprep.subr.bf16.mxu0 0
    %1632 = vmatpush1.bf16.msra.mxu0 0
    %1633 = vmatprep.subr.bf16.mxu0 0
    %1634 = vmatpush1.bf16.msra.mxu0 0
    %1635 = vmatprep.subr.bf16.mxu0 0
    %1636 = vmatpush1.bf16.msra.mxu0 0
    %1637 = vmatprep.mubr.bf16.mxu0 0
    %1638 = vmatmul.mubr.bf16.gmra.mrb[0].mxu0 %v1561
    %v1639 = vpop.f32.mrb[0].mxu0
    %v1640 = vadd.f32 0.0, %v1639
    %v1641 = vpop.f32.mrb[0].mxu0
    %v1642 = vadd.f32 0.0, %v1641
    %v1643 = vpop.f32.mrb[0].mxu0
    %v1644 = vadd.f32 0.0, %v1643
    %v1645 = vpop.f32.mrb[0].mxu0
    %v1646 = vadd.f32 0.0, %v1645
    %1647 = vdwg.mxu0
    %v1648 = vadd.f32 %v1553, %v1597
    %v1649 = vadd.f32 %v1554, %v1599
    %v1650 = vadd.f32 %v1555, %v1640
    %v1651 = vadd.f32 %v1556, %v1642
    %v1652 = vadd.f32 %v1557, %v1601
    %v1653 = vadd.f32 %v1558, %v1603
    %v1654 = vadd.f32 %v1559, %v1644
    %v1655 = vadd.f32 %v1560, %v1646
    %v1656 = vxor.u32 %v1648, 2147483648
    %v1657 = vxor.u32 %v1652, 2147483648
    %v1658 = vmul.f32 %v1656, 1.442695
    %v1659 = vpow.pop %v1658
    %v1660 = vmul.f32 %v1657, 1.442695
    %v1661 = vpow.pop %v1660
    %v1662 = vadd.f32 %v1659, 1.0
    %v1663 = vadd.f32 %v1661, 1.0
    %v1664 = vrcp.pop %v1662
    %v1665 = vmul.f32 1.0, %v1664
    %v1666 = vrcp.pop %v1663
    %v1667 = vmul.f32 1.0, %v1666
    %v1668 = vxor.u32 %v1649, 2147483648
    %v1669 = vxor.u32 %v1653, 2147483648
    %v1670 = vmul.f32 %v1668, 1.442695
    %v1671 = vpow.pop %v1670
    %v1672 = vmul.f32 %v1669, 1.442695
    %v1673 = vpow.pop %v1672
    %v1674 = vadd.f32 %v1671, 1.0
    %v1675 = vadd.f32 %v1673, 1.0
    %v1676 = vrcp.pop %v1674
    %v1677 = vmul.f32 1.0, %v1676
    %v1678 = vrcp.pop %v1675
    %v1679 = vmul.f32 1.0, %v1678
    %v1680 = vtanh.pop %v1650
    %v1681 = vtanh.pop %v1654
    %v1682 = vxor.u32 %v1651, 2147483648
    %v1683 = vxor.u32 %v1655, 2147483648
    %v1684 = vmul.f32 %v1682, 1.442695
    %v1685 = vpow.pop %v1684
    %v1686 = vmul.f32 %v1683, 1.442695
    %v1687 = vpow.pop %v1686
    %v1688 = vadd.f32 %v1685, 1.0
    %v1689 = vadd.f32 %v1687, 1.0
    %v1690 = vrcp.pop %v1688
    %v1691 = vmul.f32 1.0, %v1690
    %v1692 = vrcp.pop %v1689
    %v1693 = vmul.f32 1.0, %v1692
    %v1694 = vmul.f32 %v1677, %v1549
    %v1695 = vmul.f32 %v1679, %v1550
    %v1696 = vmul.f32 %v1665, %v1680
    %v1697 = vmul.f32 %v1667, %v1681
    %v1698 = vadd.f32 %v1694, %v1696
    %v1699 = vadd.f32 %v1695, %v1697
    %v1700 = vtanh.pop %v1698
    %v1701 = vtanh.pop %v1699
    %v1702 = vmul.f32 %v1691, %v1700
    %v1703 = vmul.f32 %v1693, %v1701
    %v1704 = vstv %s1551
    %vm1705 = vcmp.lt.s32.totalorder %v1704, %v530
    %vm1706 = vcmp.lt.s32.totalorder %v1704, %v531
    %v1707 = vsel %vm1705, %v1702, 0.0
    %v1708 = vsel %vm1706, %v1703, 0.0
    %s1709 = scalar_lea.vmem [#allocation11], 80
    %1710 = vst [vmem:[%s1709] sm:$0xff] %v1707
    %1711 = vst [vmem:[%s1709 + $0x8] sm:$0xff] %v1708
    %v1712 = vsel %vm1705, %v1702, %v1547
    %v1713 = vsel %vm1706, %v1703, %v1548
    %v1714 = vsel %vm1705, %v1698, %v1549
    %v1715 = vsel %vm1706, %v1699, %v1550
    %s1716 = sadd.s32 %s568, 6
    %s1717 = scalar_lea.vmem [#allocation2], 384
    %v1718 = vld [vmem:[%s1717] sm:$0xff]
    %v1719 = vld [vmem:[%s1717 + $0x8] sm:$0xff]
    %v1720 = vld [vmem:[%s1717 + $0x10] sm:$0xff]
    %v1721 = vld [vmem:[%s1717 + $0x18] sm:$0xff]
    %v1722 = vld [vmem:[%s1717 + $0x20] sm:$0xff]
    %v1723 = vld [vmem:[%s1717 + $0x28] sm:$0xff]
    %v1724 = vld [vmem:[%s1717 + $0x30] sm:$0xff]
    %v1725 = vld [vmem:[%s1717 + $0x38] sm:$0xff]
    %v1726 = vpack.c.bf16 %v1713, %v1712
    %1727 = vmatprep.subr.bf16.mxu0 %v675
    %1728 = vmatpush1.bf16.msra.mxu0 %v674
    %1729 = vmatprep.subr.bf16.mxu0 %v679
    %1730 = vmatpush1.bf16.msra.mxu0 %v678
    %1731 = vmatprep.subr.bf16.mxu0 %v683
    %1732 = vmatpush1.bf16.msra.mxu0 %v682
    %1733 = vmatprep.subr.bf16.mxu0 %v687
    %1734 = vmatpush1.bf16.msra.mxu0 %v686
    %1735 = vmatprep.subr.bf16.mxu0 %v691
    %1736 = vmatpush1.bf16.msra.mxu0 %v690
    %1737 = vmatprep.subr.bf16.mxu0 %v695
    %1738 = vmatpush1.bf16.msra.mxu0 %v694
    %1739 = vmatprep.subr.bf16.mxu0 %v699
    %1740 = vmatpush1.bf16.msra.mxu0 %v698
    %1741 = vmatprep.subr.bf16.mxu0 %v703
    %1742 = vmatpush1.bf16.msra.mxu0 %v702
    %1743 = vmatprep.subr.bf16.mxu0 0
    %1744 = vmatpush1.bf16.msra.mxu0 0
    %1745 = vmatprep.subr.bf16.mxu0 0
    %1746 = vmatpush1.bf16.msra.mxu0 0
    %1747 = vmatprep.subr.bf16.mxu0 0
    %1748 = vmatpush1.bf16.msra.mxu0 0
    %1749 = vmatprep.subr.bf16.mxu0 0
    %1750 = vmatpush1.bf16.msra.mxu0 0
    %1751 = vmatprep.subr.bf16.mxu0 0
    %1752 = vmatpush1.bf16.msra.mxu0 0
    %1753 = vmatprep.subr.bf16.mxu0 0
    %1754 = vmatpush1.bf16.msra.mxu0 0
    %1755 = vmatprep.subr.bf16.mxu0 0
    %1756 = vmatpush1.bf16.msra.mxu0 0
    %1757 = vmatprep.subr.bf16.mxu0 0
    %1758 = vmatpush1.bf16.msra.mxu0 0
    %1759 = vmatprep.mubr.bf16.mxu0 0
    %1760 = vmatmul.mubr.bf16.gmra.mrb[0].mxu0 %v1726
    %v1761 = vpop.f32.mrb[0].mxu0
    %v1762 = vadd.f32 0.0, %v1761
    %v1763 = vpop.f32.mrb[0].mxu0
    %v1764 = vadd.f32 0.0, %v1763
    %v1765 = vpop.f32.mrb[0].mxu0
    %v1766 = vadd.f32 0.0, %v1765
    %v1767 = vpop.f32.mrb[0].mxu0
    %v1768 = vadd.f32 0.0, %v1767
    %1769 = vdwg.mxu0
    %1770 = vmatprep.subr.bf16.mxu0 %v677
    %1771 = vmatpush1.bf16.msra.mxu0 %v676
    %1772 = vmatprep.subr.bf16.mxu0 %v681
    %1773 = vmatpush1.bf16.msra.mxu0 %v680
    %1774 = vmatprep.subr.bf16.mxu0 %v685
    %1775 = vmatpush1.bf16.msra.mxu0 %v684
    %1776 = vmatprep.subr.bf16.mxu0 %v689
    %1777 = vmatpush1.bf16.msra.mxu0 %v688
    %1778 = vmatprep.subr.bf16.mxu0 %v693
    %1779 = vmatpush1.bf16.msra.mxu0 %v692
    %1780 = vmatprep.subr.bf16.mxu0 %v697
    %1781 = vmatpush1.bf16.msra.mxu0 %v696
    %1782 = vmatprep.subr.bf16.mxu0 %v701
    %1783 = vmatpush1.bf16.msra.mxu0 %v700
    %1784 = vmatprep.subr.bf16.mxu0 %v705
    %1785 = vmatpush1.bf16.msra.mxu0 %v704
    %1786 = vmatprep.subr.bf16.mxu0 0
    %1787 = vmatpush1.bf16.msra.mxu0 0
    %1788 = vmatprep.subr.bf16.mxu0 0
    %1789 = vmatpush1.bf16.msra.mxu0 0
    %1790 = vmatprep.subr.bf16.mxu0 0
    %1791 = vmatpush1.bf16.msra.mxu0 0
    %1792 = vmatprep.subr.bf16.mxu0 0
    %1793 = vmatpush1.bf16.msra.mxu0 0
    %1794 = vmatprep.subr.bf16.mxu0 0
    %1795 = vmatpush1.bf16.msra.mxu0 0
    %1796 = vmatprep.subr.bf16.mxu0 0
    %1797 = vmatpush1.bf16.msra.mxu0 0
    %1798 = vmatprep.subr.bf16.mxu0 0
    %1799 = vmatpush1.bf16.msra.mxu0 0
    %1800 = vmatprep.subr.bf16.mxu0 0
    %1801 = vmatpush1.bf16.msra.mxu0 0
    %1802 = vmatprep.mubr.bf16.mxu0 0
    %1803 = vmatmul.mubr.bf16.gmra.mrb[0].mxu0 %v1726
    %v1804 = vpop.f32.mrb[0].mxu0
    %v1805 = vadd.f32 0.0, %v1804
    %v1806 = vpop.f32.mrb[0].mxu0
    %v1807 = vadd.f32 0.0, %v1806
    %v1808 = vpop.f32.mrb[0].mxu0
    %v1809 = vadd.f32 0.0, %v1808
    %v1810 = vpop.f32.mrb[0].mxu0
    %v1811 = vadd.f32 0.0, %v1810
    %1812 = vdwg.mxu0
    %v1813 = vadd.f32 %v1718, %v1762
    %v1814 = vadd.f32 %v1719, %v1764
    %v1815 = vadd.f32 %v1720, %v1805
    %v1816 = vadd.f32 %v1721, %v1807
    %v1817 = vadd.f32 %v1722, %v1766
    %v1818 = vadd.f32 %v1723, %v1768
    %v1819 = vadd.f32 %v1724, %v1809
    %v1820 = vadd.f32 %v1725, %v1811
    %v1821 = vxor.u32 %v1813, 2147483648
    %v1822 = vxor.u32 %v1817, 2147483648
    %v1823 = vmul.f32 %v1821, 1.442695
    %v1824 = vpow.pop %v1823
    %v1825 = vmul.f32 %v1822, 1.442695
    %v1826 = vpow.pop %v1825
    %v1827 = vadd.f32 %v1824, 1.0
    %v1828 = vadd.f32 %v1826, 1.0
    %v1829 = vrcp.pop %v1827
    %v1830 = vmul.f32 1.0, %v1829
    %v1831 = vrcp.pop %v1828
    %v1832 = vmul.f32 1.0, %v1831
    %v1833 = vxor.u32 %v1814, 2147483648
    %v1834 = vxor.u32 %v1818, 2147483648
    %v1835 = vmul.f32 %v1833, 1.442695
    %v1836 = vpow.pop %v1835
    %v1837 = vmul.f32 %v1834, 1.442695
    %v1838 = vpow.pop %v1837
    %v1839 = vadd.f32 %v1836, 1.0
    %v1840 = vadd.f32 %v1838, 1.0
    %v1841 = vrcp.pop %v1839
    %v1842 = vmul.f32 1.0, %v1841
    %v1843 = vrcp.pop %v1840
    %v1844 = vmul.f32 1.0, %v1843
    %v1845 = vtanh.pop %v1815
    %v1846 = vtanh.pop %v1819
    %v1847 = vxor.u32 %v1816, 2147483648
    %v1848 = vxor.u32 %v1820, 2147483648
    %v1849 = vmul.f32 %v1847, 1.442695
    %v1850 = vpow.pop %v1849
    %v1851 = vmul.f32 %v1848, 1.442695
    %v1852 = vpow.pop %v1851
    %v1853 = vadd.f32 %v1850, 1.0
    %v1854 = vadd.f32 %v1852, 1.0
    %v1855 = vrcp.pop %v1853
    %v1856 = vmul.f32 1.0, %v1855
    %v1857 = vrcp.pop %v1854
    %v1858 = vmul.f32 1.0, %v1857
    %v1859 = vmul.f32 %v1842, %v1714
    %v1860 = vmul.f32 %v1844, %v1715
    %v1861 = vmul.f32 %v1830, %v1845
    %v1862 = vmul.f32 %v1832, %v1846
    %v1863 = vadd.f32 %v1859, %v1861
    %v1864 = vadd.f32 %v1860, %v1862
    %v1865 = vtanh.pop %v1863
    %v1866 = vtanh.pop %v1864
    %v1867 = vmul.f32 %v1856, %v1865
    %v1868 = vmul.f32 %v1858, %v1866
    %v1869 = vstv %s1716
    %vm1870 = vcmp.lt.s32.totalorder %v1869, %v530
    %vm1871 = vcmp.lt.s32.totalorder %v1869, %v531
    %v1872 = vsel %vm1870, %v1867, 0.0
    %v1873 = vsel %vm1871, %v1868, 0.0
    %s1874 = scalar_lea.vmem [#allocation11], 96
    %1875 = vst [vmem:[%s1874] sm:$0xff] %v1872
    %1876 = vst [vmem:[%s1874 + $0x8] sm:$0xff] %v1873
    %v1877 = vsel %vm1870, %v1867, %v1712
    %v1878 = vsel %vm1871, %v1868, %v1713
    %v1879 = vsel %vm1870, %v1863, %v1714
    %v1880 = vsel %vm1871, %v1864, %v1715
    %s1881 = sadd.s32 %s568, 7
    %s1882 = scalar_lea.vmem [#allocation2], 448
    %v1883 = vld [vmem:[%s1882] sm:$0xff]
    %v1884 = vld [vmem:[%s1882 + $0x8] sm:$0xff]
    %v1885 = vld [vmem:[%s1882 + $0x10] sm:$0xff]
    %v1886 = vld [vmem:[%s1882 + $0x18] sm:$0xff]
    %v1887 = vld [vmem:[%s1882 + $0x20] sm:$0xff]
    %v1888 = vld [vmem:[%s1882 + $0x28] sm:$0xff]
    %v1889 = vld [vmem:[%s1882 + $0x30] sm:$0xff]
    %v1890 = vld [vmem:[%s1882 + $0x38] sm:$0xff]
    %v1891 = vpack.c.bf16 %v1878, %v1877
    %1892 = vmatprep.subr.bf16.mxu0 %v675
    %1893 = vmatpush1.bf16.msra.mxu0 %v674
    %1894 = vmatprep.subr.bf16.mxu0 %v679
    %1895 = vmatpush1.bf16.msra.mxu0 %v678
    %1896 = vmatprep.subr.bf16.mxu0 %v683
    %1897 = vmatpush1.bf16.msra.mxu0 %v682
    %1898 = vmatprep.subr.bf16.mxu0 %v687
    %1899 = vmatpush1.bf16.msra.mxu0 %v686
    %1900 = vmatprep.subr.bf16.mxu0 %v691
    %1901 = vmatpush1.bf16.msra.mxu0 %v690
    %1902 = vmatprep.subr.bf16.mxu0 %v695
    %1903 = vmatpush1.bf16.msra.mxu0 %v694
    %1904 = vmatprep.subr.bf16.mxu0 %v699
    %1905 = vmatpush1.bf16.msra.mxu0 %v698
    %1906 = vmatprep.subr.bf16.mxu0 %v703
    %1907 = vmatpush1.bf16.msra.mxu0 %v702
    %1908 = vmatprep.subr.bf16.mxu0 0
    %1909 = vmatpush1.bf16.msra.mxu0 0
    %1910 = vmatprep.subr.bf16.mxu0 0
    %1911 = vmatpush1.bf16.msra.mxu0 0
    %1912 = vmatprep.subr.bf16.mxu0 0
    %1913 = vmatpush1.bf16.msra.mxu0 0
    %1914 = vmatprep.subr.bf16.mxu0 0
    %1915 = vmatpush1.bf16.msra.mxu0 0
    %1916 = vmatprep.subr.bf16.mxu0 0
    %1917 = vmatpush1.bf16.msra.mxu0 0
    %1918 = vmatprep.subr.bf16.mxu0 0
    %1919 = vmatpush1.bf16.msra.mxu0 0
    %1920 = vmatprep.subr.bf16.mxu0 0
    %1921 = vmatpush1.bf16.msra.mxu0 0
    %1922 = vmatprep.subr.bf16.mxu0 0
    %1923 = vmatpush1.bf16.msra.mxu0 0
    %1924 = vmatprep.mubr.bf16.mxu0 0
    %1925 = vmatmul.mubr.bf16.gmra.mrb[0].mxu0 %v1891
    %v1926 = vpop.f32.mrb[0].mxu0
    %v1927 = vadd.f32 0.0, %v1926
    %v1928 = vpop.f32.mrb[0].mxu0
    %v1929 = vadd.f32 0.0, %v1928
    %v1930 = vpop.f32.mrb[0].mxu0
    %v1931 = vadd.f32 0.0, %v1930
    %v1932 = vpop.f32.mrb[0].mxu0
    %v1933 = vadd.f32 0.0, %v1932
    %1934 = vdwg.mxu0
    %1935 = vmatprep.subr.bf16.mxu0 %v677
    %1936 = vmatpush1.bf16.msra.mxu0 %v676
    %1937 = vmatprep.subr.bf16.mxu0 %v681
    %1938 = vmatpush1.bf16.msra.mxu0 %v680
    %1939 = vmatprep.subr.bf16.mxu0 %v685
    %1940 = vmatpush1.bf16.msra.mxu0 %v684
    %1941 = vmatprep.subr.bf16.mxu0 %v689
    %1942 = vmatpush1.bf16.msra.mxu0 %v688
    %1943 = vmatprep.subr.bf16.mxu0 %v693
    %1944 = vmatpush1.bf16.msra.mxu0 %v692
    %1945 = vmatprep.subr.bf16.mxu0 %v697
    %1946 = vmatpush1.bf16.msra.mxu0 %v696
    %1947 = vmatprep.subr.bf16.mxu0 %v701
    %1948 = vmatpush1.bf16.msra.mxu0 %v700
    %1949 = vmatprep.subr.bf16.mxu0 %v705
    %1950 = vmatpush1.bf16.msra.mxu0 %v704
    %1951 = vmatprep.subr.bf16.mxu0 0
    %1952 = vmatpush1.bf16.msra.mxu0 0
    %1953 = vmatprep.subr.bf16.mxu0 0
    %1954 = vmatpush1.bf16.msra.mxu0 0
    %1955 = vmatprep.subr.bf16.mxu0 0
    %1956 = vmatpush1.bf16.msra.mxu0 0
    %1957 = vmatprep.subr.bf16.mxu0 0
    %1958 = vmatpush1.bf16.msra.mxu0 0
    %1959 = vmatprep.subr.bf16.mxu0 0
    %1960 = vmatpush1.bf16.msra.mxu0 0
    %1961 = vmatprep.subr.bf16.mxu0 0
    %1962 = vmatpush1.bf16.msra.mxu0 0
    %1963 = vmatprep.subr.bf16.mxu0 0
    %1964 = vmatpush1.bf16.msra.mxu0 0
    %1965 = vmatprep.subr.bf16.mxu0 0
    %1966 = vmatpush1.bf16.msra.mxu0 0
    %1967 = vmatprep.mubr.bf16.mxu0 0
    %1968 = vmatmul.mubr.bf16.gmra.mrb[0].mxu0 %v1891
    %v1969 = vpop.f32.mrb[0].mxu0
    %v1970 = vadd.f32 0.0, %v1969
    %v1971 = vpop.f32.mrb[0].mxu0
    %v1972 = vadd.f32 0.0, %v1971
    %v1973 = vpop.f32.mrb[0].mxu0
    %v1974 = vadd.f32 0.0, %v1973
    %v1975 = vpop.f32.mrb[0].mxu0
    %v1976 = vadd.f32 0.0, %v1975
    %1977 = vdwg.mxu0
    %v1978 = vadd.f32 %v1883, %v1927
    %v1979 = vadd.f32 %v1884, %v1929
    %v1980 = vadd.f32 %v1885, %v1970
    %v1981 = vadd.f32 %v1886, %v1972
    %v1982 = vadd.f32 %v1887, %v1931
    %v1983 = vadd.f32 %v1888, %v1933
    %v1984 = vadd.f32 %v1889, %v1974
    %v1985 = vadd.f32 %v1890, %v1976
    %v1986 = vxor.u32 %v1978, 2147483648
    %v1987 = vxor.u32 %v1982, 2147483648
    %v1988 = vmul.f32 %v1986, 1.442695
    %v1989 = vpow.pop %v1988
    %v1990 = vmul.f32 %v1987, 1.442695
    %v1991 = vpow.pop %v1990
    %v1992 = vadd.f32 %v1989, 1.0
    %v1993 = vadd.f32 %v1991, 1.0
    %v1994 = vrcp.pop %v1992
    %v1995 = vmul.f32 1.0, %v1994
    %v1996 = vrcp.pop %v1993
    %v1997 = vmul.f32 1.0, %v1996
    %v1998 = vxor.u32 %v1979, 2147483648
    %v1999 = vxor.u32 %v1983, 2147483648
    %v2000 = vmul.f32 %v1998, 1.442695
    %v2001 = vpow.pop %v2000
    %v2002 = vmul.f32 %v1999, 1.442695
    %v2003 = vpow.pop %v2002
    %v2004 = vadd.f32 %v2001, 1.0
    %v2005 = vadd.f32 %v2003, 1.0
    %v2006 = vrcp.pop %v2004
    %v2007 = vmul.f32 1.0, %v2006
    %v2008 = vrcp.pop %v2005
    %v2009 = vmul.f32 1.0, %v2008
    %v2010 = vtanh.pop %v1980
    %v2011 = vtanh.pop %v1984
    %v2012 = vxor.u32 %v1981, 2147483648
    %v2013 = vxor.u32 %v1985, 2147483648
    %v2014 = vmul.f32 %v2012, 1.442695
    %v2015 = vpow.pop %v2014
    %v2016 = vmul.f32 %v2013, 1.442695
    %v2017 = vpow.pop %v2016
    %v2018 = vadd.f32 %v2015, 1.0
    %v2019 = vadd.f32 %v2017, 1.0
    %v2020 = vrcp.pop %v2018
    %v2021 = vmul.f32 1.0, %v2020
    %v2022 = vrcp.pop %v2019
    %v2023 = vmul.f32 1.0, %v2022
    %v2024 = vmul.f32 %v2007, %v1879
    %v2025 = vmul.f32 %v2009, %v1880
    %v2026 = vmul.f32 %v1995, %v2010
    %v2027 = vmul.f32 %v1997, %v2011
    %v2028 = vadd.f32 %v2024, %v2026
    %v2029 = vadd.f32 %v2025, %v2027
    %v2030 = vtanh.pop %v2028
    %v2031 = vtanh.pop %v2029
    %v2032 = vmul.f32 %v2021, %v2030
    %v2033 = vmul.f32 %v2023, %v2031
    %v2034 = vstv %s1881
    %vm2035 = vcmp.lt.s32.totalorder %v2034, %v530
    %vm2036 = vcmp.lt.s32.totalorder %v2034, %v531
    %v2037 = vsel %vm2035, %v2032, 0.0
    %v2038 = vsel %vm2036, %v2033, 0.0
    %s2039 = scalar_lea.vmem [#allocation11], 112
    %2040 = vst [vmem:[%s2039] sm:$0xff] %v2037
    %2041 = vst [vmem:[%s2039 + $0x8] sm:$0xff] %v2038
    %v2042 = vsel %vm2035, %v2032, %v1877
    %v2043 = vsel %vm2036, %v2033, %v1878
    %v2044 = vsel %vm2035, %v2028, %v1879
    %v2045 = vsel %vm2036, %v2029, %v1880
    %2046 = vst [vmem:[#allocation12] sm:$0xff] %v2042
    %2047 = vst [vmem:[#allocation12 + $0x8] sm:$0xff] %v2043
    %2048 = vst [vmem:[#allocation14] sm:$0xff] %v2044
    %2049 = vst [vmem:[#allocation14 + $0x8] sm:$0xff] %v2045
    // Predicated region
    $region42: #{tpu_custom_call.1} parent=1 // pred_check
      _
    $region43: #{tpu_custom_call.1} parent=1 // pred_check_branch
      %2051 = sbr.rel (0) target = $region45
    $region44: #{tpu_custom_call.1} parent=1 // pred_region
      %s2053 = ssub.s32 2048, 2048
      %2054 = vsyncadd [#allocation5], %s2053
      %s2055 = sshll.u32 [#allocation11], 4
      %s2056 = int_to_ptr.vmem [resolvable:$true] %s2055
      %2061 = dma.vmem_to_hbm [thread:$0]  %s2056, 2048, %s5, [#allocation5], 128, 128, 8
    $region45: #{tpu_custom_call.1} parent=1 // pred_fallthru
      _
    // Predicated region
    $region46: #{tpu_custom_call.1} parent=1 // pred_check
      _
    $region47: #{tpu_custom_call.1} parent=1 // pred_check_branch
      %2063 = sbr.rel (0) target = $region49
    $region48: #{tpu_custom_call.1} parent=1 // pred_region
      %s2065 = ssub.s32 256, 256
      %2066 = vsyncadd [#allocation13], %s2065
      %s2067 = sshll.u32 [#allocation12], 4
      %s2068 = int_to_ptr.vmem [resolvable:$true] %s2067
      %2073 = dma.vmem_to_hbm [thread:$0]  %s2068, 256, %s6, [#allocation13], 128, 128, 8
    $region49: #{tpu_custom_call.1} parent=1 // pred_fallthru
      _
    // Predicated region
    $region50: #{tpu_custom_call.1} parent=1 // pred_check
      _
    $region51: #{tpu_custom_call.1} parent=1 // pred_check_branch
      %2075 = sbr.rel (0) target = $region53
    $region52: #{tpu_custom_call.1} parent=1 // pred_region
      %s2077 = ssub.s32 256, 256
      %2078 = vsyncadd [#allocation13], %s2077
      %s2079 = sshll.u32 [#allocation14], 4
      %s2080 = int_to_ptr.vmem [resolvable:$true] %s2079
      %2085 = dma.vmem_to_hbm [thread:$0]  %s2080, 256, %s7, [#allocation13], 128, 128, 8
    $region53: #{tpu_custom_call.1} parent=1 // pred_fallthru
      _
    // Predicated region
    $region54: #{tpu_custom_call.1} parent=1 // pred_check
      _
    $region55: #{tpu_custom_call.1} parent=1 // pred_check_branch
      %2087 = sbr.rel (0) target = $region57
    $region56: #{tpu_custom_call.1} parent=1 // pred_region
      %2088 = dma.done [#allocation5], 2048
    $region57: #{tpu_custom_call.1} parent=1 // pred_fallthru
      _
    // Predicated region
    $region58: #{tpu_custom_call.1} parent=1 // pred_check
      _
    $region59: #{tpu_custom_call.1} parent=1 // pred_check_branch
      %2090 = sbr.rel (0) target = $region61
    $region60: #{tpu_custom_call.1} parent=1 // pred_region
      %2091 = dma.done [#allocation13], 256
    $region61: #{tpu_custom_call.1} parent=1 // pred_fallthru
      _
    // Predicated region
    $region62: #{tpu_custom_call.1} parent=1 // pred_check
      _
    $region63: #{tpu_custom_call.1} parent=1 // pred_check_branch
      %2093 = sbr.rel (0) target = $region65
    $region64: #{tpu_custom_call.1} parent=1 // pred_region
      %2094 = dma.done [#allocation13], 256
    $region65: #{tpu_custom_call.1} parent=1 // pred_fallthru
      _
    %2095 = vsyncpa [#allocation4], 1
    %2096 = vsyncpa [#allocation7], 1
    %2097 = vsyncpa [#allocation10], 1
    %2098 = vsyncpa [#allocation5], 1
    %2099 = vsyncpa [#allocation13], 1

</llo_original>
